<compile_context>
chip_gen: v7x
topology: tpu7x:2x2x1
jax: 0.10.0
libtpu: 0.0.40
codegen_flags: <defaults>
</compile_context>

<pallas_src>
import functools
import math

import jax
import jax.numpy as jnp
import numpy as np
from jax.experimental import pallas as pl
from jax.experimental.pallas import tpu as pltpu


# ---------------------------------------------------------------------------
# Fused recurrent ponder step + online halting combine.
# grid = (M // tm, L): token tiles are independent ("parallel"); the step axis is the
# sequential recurrence ("arbitrary").  Recurrent state and combine accumulators live in
# VMEM scratch; per-tile wce / kl partials are written once at the last step.
# ---------------------------------------------------------------------------
def ponder_step_kernel(labels_ref, x_ref, w1_ref, b1_ref, w2_ref, b2_ref,
                       wproj_ref, bproj_ref, logprior_ref,
                       h_ref, logits_ref, hcp_ref, ce_ref, hpraw_ref, part_ref,
                       x_state, cumlogq, z_acc, wce_acc, kl_acc,
                       *, n_classes, c_pad):
    l = pl.program_id(1)
    n_steps = pl.num_programs(1)

    @pl.when(l == 0)
    def _():
        x_state[...] = x_ref[...]
        cumlogq[...] = jnp.zeros_like(cumlogq)
        z_acc[...] = jnp.zeros_like(z_acc)
        wce_acc[...] = jnp.zeros_like(wce_acc)
        kl_acc[...] = jnp.zeros_like(kl_acc)

    x = x_state[...]                                             # (tm, D) f32 carried state

    # block: residual MLP (post-norm config -> Identity norms); bf16 MXU, f32 accumulate.
    hmid = jnp.tanh(jnp.dot(x.astype(jnp.bfloat16), w1_ref[...],
                            preferred_element_type=jnp.float32) + b1_ref[...])
    y = x + jnp.dot(hmid.astype(jnp.bfloat16), w2_ref[...],
                    preferred_element_type=jnp.float32) + b2_ref[...]
    x_state[...] = y

    # Fused, lane-aligned classifier + halting head: Wproj = [Wlog | 0 | wh^T | 0].
    z = jnp.dot(y.astype(jnp.bfloat16), wproj_ref[...],
                preferred_element_type=jnp.float32) + bproj_ref[...]   # (tm, c_pad + 128)
    logits = z[:, :c_pad]                                        # cols >= n_classes are 0
    # Halting block is 128 lanes wide with the logit in lane 0 and exact zeros elsewhere,
    # so a lane reduction recovers it without crossing a tile boundary.
    hl = jnp.sum(z[:, c_pad:], axis=-1, keepdims=True)           # (tm, 1)
    hcp = jax.nn.sigmoid(hl)                                     # halting conditional prob

    # Per-(step, token) softmax cross entropy in f32 (padded columns masked out).
    if n_classes < c_pad:
        col = jax.lax.broadcasted_iota(jnp.int32, logits.shape, 1)
        ce_logits = jnp.where(col < n_classes, logits, -1e30)
    else:
        ce_logits = logits
    mx = jnp.max(ce_logits, axis=-1, keepdims=True)
    lse = jnp.log(jnp.sum(jnp.exp(ce_logits - mx), axis=-1, keepdims=True)) + mx
    cls = jax.lax.broadcasted_iota(jnp.int32, logits.shape, 1)
    picked = jnp.sum(jnp.where(cls == labels_ref[...], logits, 0.0),
                     axis=-1, keepdims=True)
    ce = lse - picked                                            # (tm, 1)

    # Per-step HBM writes: hidden / logits in bf16; hcp / ce / raw halting prob lane-dense.
    h_ref[...] = y.astype(jnp.bfloat16)[None]                    # (1, tm, D)
    logits_ref[...] = logits.astype(jnp.bfloat16)[None]          # (1, tm, c_pad)

    hcp_row = jnp.transpose(hcp)                                 # (1, tm)  (XLU, idle slot)
    ce_row = jnp.transpose(ce)                                   # (1, tm)
    hp_row = jnp.exp(cumlogq[...]) * hcp_row                     # unnormalized calc_geometric
    hcp_ref[...] = hcp_row[None]                                 # (1, 1, tm)
    ce_ref[...] = ce_row[None]
    hpraw_ref[...] = hp_row[None]

    # Online combine (geometric halting distribution, halt-weighted CE, KL vs prior).
    lp = logprior_ref[l]                                         # scalar log-prior from SMEM
    z_acc[...] += hp_row
    wce_acc[...] += ce_row * hp_row
    kl_acc[...] += hp_row * (jnp.log(jnp.maximum(hp_row, 1e-30)) - lp)
    cumlogq[...] += jnp.log(jnp.clip(1.0 - hcp_row, 1e-10, 1.0))  # safe_cumprod clip

    @pl.when(l == n_steps - 1)
    def _():
        # 'condition_on_halting' normalization with an epsilon guard; using
        # sum_l hp_norm = 1 the per-token KL becomes A/Z - log Z.
        zn = jnp.maximum(z_acc[...], 1e-30)
        wce_tok = wce_acc[...] / zn
        kl_tok = kl_acc[...] / zn - jnp.log(zn)
        wce_part = jnp.sum(wce_tok)
        kl_part = jnp.sum(kl_tok)
        sub = jax.lax.broadcasted_iota(jnp.int32, (8, 128), 0)
        lane = jax.lax.broadcasted_iota(jnp.int32, (8, 128), 1)
        part = (jnp.where((sub == 0) & (lane == 0), wce_part, 0.0)
                + jnp.where((sub == 0) & (lane == 1), kl_part, 0.0))
        part_ref[...] = part[None]                               # (1, 8, 128) per-tile partial


# ---------------------------------------------------------------------------
# Wrapper (glue)
# ---------------------------------------------------------------------------
def _pick_token_tile(m_total):
    # Prefer big tiles: fewer ~0.35us grid steps and a full 256-wide MXU M-dim on v6e/v7x.
    for cand in (512, 256, 128):
        if m_total % cand == 0:
            return cand
    assert m_total % 8 == 0, "B*T must be a multiple of 8"
    return m_total


def _vmem_limit_bytes():
    # v5e/v6e: 128 MiB physical but only 16/32 MiB scoped default -> raise to 96 MiB.
    # v7x: 64 MiB physical -> keep the working set around 48 MiB.
    try:
        kind = jax.devices()[0].device_kind.lower()
    except Exception:
        kind = ""
    if ("v5" in kind) or ("v6" in kind):
        return 96 * 1024 * 1024
    return 48 * 1024 * 1024


def ponder_forward_train(x, labels, params, log_prior, L, kl_weight):
    W1, b1, W2, b2, wh, bh, Wlog, blog = params
    B, T, D = x.shape
    F = W1.shape[1]
    C = Wlog.shape[1]
    M = B * T

    tm = _pick_token_tile(M)
    n_tiles = M // tm

    c_pad = ((C + 127) // 128) * 128              # lane-aligned classifier width
    width = c_pad + 128                           # + 128-wide halting block

    x2 = x.reshape(M, D)
    labels2 = labels.reshape(M, 1).astype(jnp.int32)

    # Fused lane-aligned projection: [Wlog | zeros | wh^T | zeros], bias likewise.
    Wproj = jnp.zeros((D, width), jnp.float32)
    Wproj = Wproj.at[:, :C].set(Wlog)
    Wproj = Wproj.at[:, c_pad].set(wh[0])
    bproj = jnp.zeros((1, width), jnp.float32)
    bproj = bproj.at[:, :C].set(blog[0])
    bproj = bproj.at[:, c_pad].set(bh[0, 0])

    # bf16 operands for the MXU; biases / accumulation / elementwise math stay f32.
    W1b = W1.astype(jnp.bfloat16)
    W2b = W2.astype(jnp.bfloat16)
    Wprojb = Wproj.astype(jnp.bfloat16)

    log_prior1d = jnp.reshape(log_prior, (L,)).astype(jnp.float32)

    kernel = functools.partial(ponder_step_kernel, n_classes=C, c_pad=c_pad)

    (h_stack, logits_p, hcp3, ce3, hpraw3, partials) = pl.pallas_call(
        kernel,
        out_shape=(
            jax.ShapeDtypeStruct((L, M, D), jnp.bfloat16),        # hiddens (bf16 writeback)
            jax.ShapeDtypeStruct((L, M, c_pad), jnp.bfloat16),    # padded logits (bf16)
            jax.ShapeDtypeStruct((L, 1, M), jnp.float32),         # halting conditional probs
            jax.ShapeDtypeStruct((L, 1, M), jnp.float32),         # per-step CE
            jax.ShapeDtypeStruct((L, 1, M), jnp.float32),         # unnormalized halting probs
            jax.ShapeDtypeStruct((n_tiles, 8, 128), jnp.float32),  # per-tile (wce, kl) partials
        ),
        grid=(n_tiles, L),
        in_specs=[
            pl.BlockSpec((tm, 1), lambda m, l: (m, 0)),           # labels (int32)
            pl.BlockSpec((tm, D), lambda m, l: (m, 0)),           # x
            pl.BlockSpec((D, F), lambda m, l: (0, 0)),            # W1 (bf16, resident)
            pl.BlockSpec((1, F), lambda m, l: (0, 0)),            # b1
            pl.BlockSpec((F, D), lambda m, l: (0, 0)),            # W2 (bf16, resident)
            pl.BlockSpec((1, D), lambda m, l: (0, 0)),            # b2
            pl.BlockSpec((D, width), lambda m, l: (0, 0)),        # [Wlog|wh^T] (bf16)
            pl.BlockSpec((1, width), lambda m, l: (0, 0)),        # [blog|bh]
            pl.BlockSpec(memory_space=pltpu.MemorySpace.SMEM),    # log prior (L,) -> SMEM
        ],
        out_specs=(
            pl.BlockSpec((1, tm, D), lambda m, l: (l, m, 0)),
            pl.BlockSpec((1, tm, c_pad), lambda m, l: (l, m, 0)),
            pl.BlockSpec((1, 1, tm), lambda m, l: (l, 0, m)),
            pl.BlockSpec((1, 1, tm), lambda m, l: (l, 0, m)),
            pl.BlockSpec((1, 1, tm), lambda m, l: (l, 0, m)),
            pl.BlockSpec((1, 8, 128), lambda m, l: (m, 0, 0)),
        ),
        scratch_shapes=[
            pltpu.VMEM((tm, D), jnp.float32),     # recurrent hidden state
            pltpu.VMEM((1, tm), jnp.float32),     # exclusive cumsum of log(1 - p)
            pltpu.VMEM((1, tm), jnp.float32),     # halting-prob normalizer Z
            pltpu.VMEM((1, tm), jnp.float32),     # sum_l ce_l * hp_l
            pltpu.VMEM((1, tm), jnp.float32),     # sum_l hp_l * (log hp_l - log prior_l)
        ],
        compiler_params=pltpu.CompilerParams(
            dimension_semantics=("parallel", "arbitrary"),
            vmem_limit_bytes=_vmem_limit_bytes(),
        ),
    )(labels2, x2, W1b, b1, W2b, b2, Wprojb, bproj, log_prior1d)

    # Trivial XLA reduces over the per-tile partials (token axis stays parallel in-kernel).
    wce = jnp.sum(partials[:, 0, 0]) / float(M)           # mean over (B, T)
    # torch F.kl_div(reduction='batchmean') divides by input.size(0); the wrapper passes the
    # prior (length L*T) as `input`, so the divisor is L*T (not B).
    kl = jnp.sum(partials[:, 0, 1]) / float(L * T)
    loss = wce + kl_weight * kl

    hcp2 = hcp3.reshape(L, M)
    ce2 = ce3.reshape(L, M)
    hpraw2 = hpraw3.reshape(L, M)
    hp2 = hpraw2 / jnp.maximum(jnp.sum(hpraw2, axis=0, keepdims=True), 1e-30)

    # Back to the PyTorch [B, L, T, ...] convention (cheap XLA transposes in glue).
    intermediate_outputs = dict(
        hiddens=jnp.transpose(h_stack.reshape(L, B, T, D), (1, 0, 2, 3)).astype(jnp.float32),
        logits=jnp.transpose(logits_p[:, :, :C].reshape(L, B, T, C),
                             (1, 0, 2, 3)).astype(jnp.float32),
        halting_conditional_probs=jnp.transpose(hcp2.reshape(L, B, T), (1, 0, 2)),
        halting_probs=jnp.transpose(hp2.reshape(L, B, T), (1, 0, 2)),
        ce_loss=jnp.transpose(ce2.reshape(L, B, T), (1, 0, 2)),
        halt_weighted_ce_loss=wce,
        kl_div_loss=kl,
        loss=loss,
    )
    return loss, intermediate_outputs


# ---------------------------------------------------------------------------
# Pure-JAX reference (mirrors the PyTorch forward_train and the kernel's precision
# policy: bf16 matmul operands with f32 accumulation, elementwise math in f32).
# ---------------------------------------------------------------------------
def _mm_bf16(a, w):
    return jax.lax.dot_general(
        a.astype(jnp.bfloat16), w.astype(jnp.bfloat16),
        dimension_numbers=(((a.ndim - 1,), (0,)), ((), ())),
        preferred_element_type=jnp.float32)


def ref_forward_train(x, labels, params, log_prior, L, kl_weight):
    W1, b1, W2, b2, wh, bh, Wlog, blog = params
    hs, hls = [], []
    cur = x
    for _ in range(L):
        h = jnp.tanh(_mm_bf16(cur, W1) + b1[0])
        y = cur + _mm_bf16(h, W2) + b2[0]
        hl = _mm_bf16(y, jnp.transpose(wh))[..., 0] + bh[0, 0]
        hs.append(y)
        hls.append(hl)
        cur = y
    H = jnp.stack(hs, axis=1)                          # [B, L, T, D]
    HL = jnp.stack(hls, axis=1)                        # [B, L, T]
    p = jax.nn.sigmoid(HL)
    logq = jnp.log(jnp.clip(1.0 - p, 1e-10, 1.0))
    cum = jnp.exp(jnp.cumsum(logq, axis=1))
    excl = jnp.concatenate([jnp.ones_like(cum[:, :1]), cum[:, :-1]], axis=1)
    hp = excl * p
    hp = hp / hp.sum(axis=1, keepdims=True)
    logits = _mm_bf16(H, Wlog) + blog[0]
    mx = jnp.max(logits, axis=-1, keepdims=True)
    lse = jnp.log(jnp.sum(jnp.exp(logits - mx), axis=-1)) + mx[..., 0]
    lab = jnp.broadcast_to(labels[:, None, :], hp.shape)
    picked = jnp.take_along_axis(logits, lab[..., None], axis=-1)[..., 0]
    ce = lse - picked
    wce = jnp.mean(jnp.sum(ce * hp, axis=1))
    T = x.shape[1]
    kl = jnp.sum(hp * (jnp.log(hp) - jnp.reshape(log_prior, (1, L, 1)))) / (L * T)
    loss = wce + kl_weight * kl
    return loss, dict(logits=logits, halting_probs=hp, ce_loss=ce,
                      halting_conditional_probs=p)


def make_log_prior(lam, L):
    # calc_geometric(full((L,), lam)) then 'condition_on_halting' normalization.
    q = min(max(1.0 - lam, 1e-10), 1.0)
    cum = np.exp(np.cumsum(np.log(np.full(L, q, np.float64))))
    excl = np.concatenate([[1.0], cum[:-1]])
    prior = excl * lam
    prior = prior / prior.sum()
    return jnp.asarray(np.log(prior), jnp.float32).reshape(L, 1)


if __name__ == "__main__":
    B, T, D, C = 2, 8, 32, 16          # batch, seq, d_model, n_classes (small demo shapes;
    F = 2 * D                          # real workloads should use 128-multiples for D/F/C)
    lam, eps, kl_weight = 0.2, 0.05, 0.01
    L = math.ceil(math.log(eps) / math.log(1.0 - lam))   # train_max_steps (= 14)

    key = jax.random.PRNGKey(0)
    ks = jax.random.split(key, 9)
    x = jax.random.normal(ks[0], (B, T, D), jnp.float32)
    labels = jax.random.randint(ks[1], (B, T), 0, C, jnp.int32)

    # Deterministic synthetic parameters (shapes from the module definitions).
    W1 = jax.random.normal(ks[2], (D, F), jnp.float32) * (0.5 / math.sqrt(D))
    b1 = jax.random.normal(ks[3], (1, F), jnp.float32) * 0.1
    W2 = jax.random.normal(ks[4], (F, D), jnp.float32) * (0.5 / math.sqrt(F))
    b2 = jax.random.normal(ks[5], (1, D), jnp.float32) * 0.1
    wh = jax.random.normal(ks[6], (1, D), jnp.float32) * (1.0 / math.sqrt(D))    # Linear(D, 1)
    bh = jnp.zeros((1, 1), jnp.float32)
    Wlog = jax.random.normal(ks[7], (D, C), jnp.float32) * (1.0 / math.sqrt(D))  # Linear(D, C)
    blog = jax.random.normal(ks[8], (1, C), jnp.float32) * 0.1
    params = (W1, b1, W2, b2, wh, bh, Wlog, blog)

    log_prior = make_log_prior(lam, L)

    loss, outs = ponder_forward_train(x, labels, params, log_prior, L, kl_weight)
    jax.block_until_ready(loss)

    # Sanity check against the pure-JAX reference of the PyTorch semantics.
    ref_loss, ref_outs = ref_forward_train(x, labels, params, log_prior, L, kl_weight)
    np.testing.assert_allclose(np.array(loss), np.array(ref_loss), rtol=1e-2, atol=1e-2)
    np.testing.assert_allclose(np.array(outs["logits"]), np.array(ref_outs["logits"]),
                               rtol=1e-2, atol=2e-2)
    np.testing.assert_allclose(np.array(outs["halting_probs"]),
                               np.array(ref_outs["halting_probs"]), rtol=1e-2, atol=1e-2)
    np.testing.assert_allclose(np.array(outs["ce_loss"]), np.array(ref_outs["ce_loss"]),
                               rtol=1e-2, atol=1e-2)
    np.testing.assert_allclose(np.array(outs["halting_conditional_probs"]),
                               np.array(ref_outs["halting_conditional_probs"]),
                               rtol=1e-2, atol=1e-2)
    assert bool(jnp.isfinite(loss))

    print("KERNEL_OK")
</pallas_src>

<mosaic_0001>
module attributes {stable_mosaic.version = 11 : i64} {
  func.func @ponder_step_kernel(%arg0: i32, %arg1: i32, %arg2: memref<16x1xi32, #tpu.memory_space<vmem>>, %arg3: memref<16x32xf32, #tpu.memory_space<vmem>>, %arg4: memref<32x64xbf16, #tpu.memory_space<vmem>>, %arg5: memref<1x64xf32, #tpu.memory_space<vmem>>, %arg6: memref<64x32xbf16, #tpu.memory_space<vmem>>, %arg7: memref<1x32xf32, #tpu.memory_space<vmem>>, %arg8: memref<32x256xbf16, #tpu.memory_space<vmem>>, %arg9: memref<1x256xf32, #tpu.memory_space<vmem>>, %arg10: memref<14xf32, #tpu.memory_space<smem>>, %arg11: memref<1x16x32xbf16, #tpu.memory_space<vmem>>, %arg12: memref<1x16x128xbf16, #tpu.memory_space<vmem>>, %arg13: memref<1x1x16xf32, #tpu.memory_space<vmem>>, %arg14: memref<1x1x16xf32, #tpu.memory_space<vmem>>, %arg15: memref<1x1x16xf32, #tpu.memory_space<vmem>>, %arg16: memref<1x8x128xf32, #tpu.memory_space<vmem>>, %arg17: memref<16x32xf32, #tpu.memory_space<vmem>>, %arg18: memref<1x16xf32, #tpu.memory_space<vmem>>, %arg19: memref<1x16xf32, #tpu.memory_space<vmem>>, %arg20: memref<1x16xf32, #tpu.memory_space<vmem>>, %arg21: memref<1x16xf32, #tpu.memory_space<vmem>>) attributes {dimension_semantics = [#tpu.dimension_semantics<parallel>, #tpu.dimension_semantics<arbitrary>], iteration_bounds = array<i64: 1, 14>, scalar_prefetch = 0 : i64, scratch_operands = 5 : i64, tpu.core_type = #tpu.core_type<tc>, window_params = [{transform_indices = @transform_0, window_bounds = array<i64: 16, 1>}, {transform_indices = @transform_1, window_bounds = array<i64: 16, 32>}, {pipeline_mode = #tpu.pipeline_mode<synchronous>, transform_indices = @transform_2, window_bounds = array<i64: 32, 64>}, {pipeline_mode = #tpu.pipeline_mode<synchronous>, transform_indices = @transform_3, window_bounds = array<i64: 1, 64>}, {pipeline_mode = #tpu.pipeline_mode<synchronous>, transform_indices = @transform_4, window_bounds = array<i64: 64, 32>}, {pipeline_mode = #tpu.pipeline_mode<synchronous>, transform_indices = @transform_5, window_bounds = array<i64: 1, 32>}, {pipeline_mode = #tpu.pipeline_mode<synchronous>, transform_indices = @transform_6, window_bounds = array<i64: 32, 256>}, {pipeline_mode = #tpu.pipeline_mode<synchronous>, transform_indices = @transform_7, window_bounds = array<i64: 1, 256>}, {transform_indices = @transform_8, window_bounds = array<i64: 14>}, {transform_indices = @transform_9, window_bounds = array<i64: 1, 16, 32>}, {transform_indices = @transform_10, window_bounds = array<i64: 1, 16, 128>}, {transform_indices = @transform_11, window_bounds = array<i64: 1, 1, 16>}, {transform_indices = @transform_12, window_bounds = array<i64: 1, 1, 16>}, {transform_indices = @transform_13, window_bounds = array<i64: 1, 1, 16>}, {transform_indices = @transform_14, window_bounds = array<i64: 1, 8, 128>}]} {
    %c0_i32 = arith.constant 0 : i32
    %0 = arith.cmpi eq, %arg1, %c0_i32 : i32
    %1 = arith.extui %0 : i1 to i32
    %c0_i32_0 = arith.constant 0 : i32
    %2 = arith.cmpi ne, %1, %c0_i32_0 : i32
    scf.if %2 {
      %c0_65 = arith.constant 0 : index
      %c0_66 = arith.constant 0 : index
      %105 = vector.load %arg3[%c0_65, %c0_66] : memref<16x32xf32, #tpu.memory_space<vmem>>, vector<16x32xf32>
      %c0_67 = arith.constant 0 : index
      %c0_68 = arith.constant 0 : index
      %106 = vector.load %arg17[%c0_67, %c0_68] : memref<16x32xf32, #tpu.memory_space<vmem>>, vector<16x32xf32>
      tpu.vector_store %arg17[%c0_67, %c0_68], %105 {strides = array<i32>} : memref<16x32xf32, #tpu.memory_space<vmem>>, vector<16x32xf32>,
      %cst_69 = arith.constant 0.000000e+00 : f32
      %107 = vector.broadcast %cst_69 : f32 to vector<1x16xf32>
      %c0_70 = arith.constant 0 : index
      %c0_71 = arith.constant 0 : index
      %108 = vector.load %arg18[%c0_70, %c0_71] : memref<1x16xf32, #tpu.memory_space<vmem>>, vector<1x16xf32>
      tpu.vector_store %arg18[%c0_70, %c0_71], %107 {strides = array<i32>} : memref<1x16xf32, #tpu.memory_space<vmem>>, vector<1x16xf32>,
      %cst_72 = arith.constant 0.000000e+00 : f32
      %109 = vector.broadcast %cst_72 : f32 to vector<1x16xf32>
      %c0_73 = arith.constant 0 : index
      %c0_74 = arith.constant 0 : index
      %110 = vector.load %arg19[%c0_73, %c0_74] : memref<1x16xf32, #tpu.memory_space<vmem>>, vector<1x16xf32>
      tpu.vector_store %arg19[%c0_73, %c0_74], %109 {strides = array<i32>} : memref<1x16xf32, #tpu.memory_space<vmem>>, vector<1x16xf32>,
      %cst_75 = arith.constant 0.000000e+00 : f32
      %111 = vector.broadcast %cst_75 : f32 to vector<1x16xf32>
      %c0_76 = arith.constant 0 : index
      %c0_77 = arith.constant 0 : index
      %112 = vector.load %arg20[%c0_76, %c0_77] : memref<1x16xf32, #tpu.memory_space<vmem>>, vector<1x16xf32>
      tpu.vector_store %arg20[%c0_76, %c0_77], %111 {strides = array<i32>} : memref<1x16xf32, #tpu.memory_space<vmem>>, vector<1x16xf32>,
      %cst_78 = arith.constant 0.000000e+00 : f32
      %113 = vector.broadcast %cst_78 : f32 to vector<1x16xf32>
      %c0_79 = arith.constant 0 : index
      %c0_80 = arith.constant 0 : index
      %114 = vector.load %arg21[%c0_79, %c0_80] : memref<1x16xf32, #tpu.memory_space<vmem>>, vector<1x16xf32>
      tpu.vector_store %arg21[%c0_79, %c0_80], %113 {strides = array<i32>} : memref<1x16xf32, #tpu.memory_space<vmem>>, vector<1x16xf32>,
    } else {
    }
    %c0 = arith.constant 0 : index
    %c0_1 = arith.constant 0 : index
    %3 = vector.load %arg17[%c0, %c0_1] : memref<16x32xf32, #tpu.memory_space<vmem>>, vector<16x32xf32>
    %4 = arith.truncf %3 : vector<16x32xf32> to vector<16x32xbf16>
    %c0_2 = arith.constant 0 : index
    %c0_3 = arith.constant 0 : index
    %5 = vector.load %arg4[%c0_2, %c0_3] : memref<32x64xbf16, #tpu.memory_space<vmem>>, vector<32x64xbf16>
    %cst = arith.constant dense<0.000000e+00> : vector<16x64xf32>
    %6 = tpu.matmul %4, %5, %cst {dimension_numbers = #tpu.dot_dimension_numbers<[1], [0], [0], [1], [0, 0, 1, 1], [], []>} : vector<16x32xbf16>, vector<32x64xbf16>, vector<16x64xf32> -> vector<16x64xf32>
    %c0_4 = arith.constant 0 : index
    %c0_5 = arith.constant 0 : index
    %7 = vector.load %arg5[%c0_4, %c0_5] : memref<1x64xf32, #tpu.memory_space<vmem>>, vector<1x64xf32>
    %8 = vector.broadcast %7 : vector<1x64xf32> to vector<16x64xf32>
    %9 = arith.addf %6, %8 : vector<16x64xf32>
    %10 = math.tanh %9 : vector<16x64xf32>
    %11 = arith.truncf %10 : vector<16x64xf32> to vector<16x64xbf16>
    %c0_6 = arith.constant 0 : index
    %c0_7 = arith.constant 0 : index
    %12 = vector.load %arg6[%c0_6, %c0_7] : memref<64x32xbf16, #tpu.memory_space<vmem>>, vector<64x32xbf16>
    %cst_8 = arith.constant dense<0.000000e+00> : vector<16x32xf32>
    %13 = tpu.matmul %11, %12, %cst_8 {dimension_numbers = #tpu.dot_dimension_numbers<[1], [0], [0], [1], [0, 0, 1, 1], [], []>} : vector<16x64xbf16>, vector<64x32xbf16>, vector<16x32xf32> -> vector<16x32xf32>
    %14 = arith.addf %3, %13 : vector<16x32xf32>
    %c0_9 = arith.constant 0 : index
    %c0_10 = arith.constant 0 : index
    %15 = vector.load %arg7[%c0_9, %c0_10] : memref<1x32xf32, #tpu.memory_space<vmem>>, vector<1x32xf32>
    %16 = vector.broadcast %15 : vector<1x32xf32> to vector<16x32xf32>
    %17 = arith.addf %14, %16 : vector<16x32xf32>
    %c0_11 = arith.constant 0 : index
    %c0_12 = arith.constant 0 : index
    %18 = vector.load %arg17[%c0_11, %c0_12] : memref<16x32xf32, #tpu.memory_space<vmem>>, vector<16x32xf32>
    tpu.vector_store %arg17[%c0_11, %c0_12], %17 {strides = array<i32>} : memref<16x32xf32, #tpu.memory_space<vmem>>, vector<16x32xf32>,
    %19 = arith.truncf %17 : vector<16x32xf32> to vector<16x32xbf16>
    %c0_13 = arith.constant 0 : index
    %c0_14 = arith.constant 0 : index
    %20 = vector.load %arg8[%c0_13, %c0_14] : memref<32x256xbf16, #tpu.memory_space<vmem>>, vector<32x256xbf16>
    %cst_15 = arith.constant dense<0.000000e+00> : vector<16x256xf32>
    %21 = tpu.matmul %19, %20, %cst_15 {dimension_numbers = #tpu.dot_dimension_numbers<[1], [0], [0], [1], [0, 0, 1, 1], [], []>} : vector<16x32xbf16>, vector<32x256xbf16>, vector<16x256xf32> -> vector<16x256xf32>
    %c0_16 = arith.constant 0 : index
    %c0_17 = arith.constant 0 : index
    %22 = vector.load %arg9[%c0_16, %c0_17] : memref<1x256xf32, #tpu.memory_space<vmem>>, vector<1x256xf32>
    %23 = vector.broadcast %22 : vector<1x256xf32> to vector<16x256xf32>
    %24 = arith.addf %21, %23 : vector<16x256xf32>
    %25 = vector.extract_strided_slice %24 {offsets = [0, 0], sizes = [16, 128], strides = [1, 1]} : vector<16x256xf32> to vector<16x128xf32>
    %26 = vector.extract_strided_slice %24 {offsets = [0, 128], sizes = [16, 128], strides = [1, 1]} : vector<16x256xf32> to vector<16x128xf32>
    %cst_18 = arith.constant dense<0.000000e+00> : vector<16xf32>
    %27 = vector.multi_reduction <add>, %26, %cst_18 [1] : vector<16x128xf32> to vector<16xf32>
    %28 = vector.shape_cast %27 : vector<16xf32> to vector<16x1xf32>
    %29 = arith.negf %28 : vector<16x1xf32>
    %30 = math.exp %29 : vector<16x1xf32>
    %cst_19 = arith.constant 1.000000e+00 : f32
    %31 = vector.broadcast %cst_19 : f32 to vector<16x1xf32>
    %32 = arith.addf %31, %30 : vector<16x1xf32>
    %33 = arith.divf %31, %32 : vector<16x1xf32>
    %34 = tpu.iota {dimensions = array<i32: 1>} : vector<16x128xi32>
    %c16_i32 = arith.constant 16 : i32
    %35 = vector.broadcast %c16_i32 : i32 to vector<16x128xi32>
    %36 = arith.cmpi slt, %34, %35 : vector<16x128xi32>
    %cst_20 = arith.constant -1.000000e+30 : f32
    %37 = vector.broadcast %cst_20 : f32 to vector<16x128xf32>
    %38 = arith.select %36, %25, %37 : vector<16x128xi1>, vector<16x128xf32>
    %cst_21 = arith.constant dense<0xFF800000> : vector<16xf32>
    %39 = vector.multi_reduction <maximumf>, %38, %cst_21 [1] : vector<16x128xf32> to vector<16xf32>
    %40 = vector.shape_cast %39 : vector<16xf32> to vector<16x1xf32>
    %41 = vector.broadcast %40 : vector<16x1xf32> to vector<16x128xf32>
    %42 = arith.subf %38, %41 : vector<16x128xf32>
    %43 = math.exp %42 : vector<16x128xf32>
    %cst_22 = arith.constant dense<0.000000e+00> : vector<16xf32>
    %44 = vector.multi_reduction <add>, %43, %cst_22 [1] : vector<16x128xf32> to vector<16xf32>
    %45 = vector.shape_cast %44 : vector<16xf32> to vector<16x1xf32>
    %46 = math.log %45 : vector<16x1xf32>
    %47 = arith.addf %46, %40 : vector<16x1xf32>
    %48 = tpu.iota {dimensions = array<i32: 1>} : vector<16x128xi32>
    %c0_23 = arith.constant 0 : index
    %c0_24 = arith.constant 0 : index
    %49 = vector.load %arg2[%c0_23, %c0_24] : memref<16x1xi32, #tpu.memory_space<vmem>>, vector<16x1xi32>
    %50 = vector.broadcast %49 : vector<16x1xi32> to vector<16x128xi32>
    %51 = arith.cmpi eq, %48, %50 : vector<16x128xi32>
    %cst_25 = arith.constant 0.000000e+00 : f32
    %52 = vector.broadcast %cst_25 : f32 to vector<16x128xf32>
    %53 = arith.select %51, %25, %52 : vector<16x128xi1>, vector<16x128xf32>
    %cst_26 = arith.constant dense<0.000000e+00> : vector<16xf32>
    %54 = vector.multi_reduction <add>, %53, %cst_26 [1] : vector<16x128xf32> to vector<16xf32>
    %55 = vector.shape_cast %54 : vector<16xf32> to vector<16x1xf32>
    %56 = arith.subf %47, %55 : vector<16x1xf32>
    %57 = arith.truncf %17 : vector<16x32xf32> to vector<16x32xbf16>
    %58 = vector.shape_cast %57 : vector<16x32xbf16> to vector<1x16x32xbf16>
    %c0_27 = arith.constant 0 : index
    %c0_28 = arith.constant 0 : index
    %c0_29 = arith.constant 0 : index
    %59 = vector.load %arg11[%c0_27, %c0_28, %c0_29] : memref<1x16x32xbf16, #tpu.memory_space<vmem>>, vector<1x16x32xbf16>
    tpu.vector_store %arg11[%c0_27, %c0_28, %c0_29], %58 {strides = array<i32>} : memref<1x16x32xbf16, #tpu.memory_space<vmem>>, vector<1x16x32xbf16>,
    %60 = arith.truncf %25 : vector<16x128xf32> to vector<16x128xbf16>
    %61 = vector.shape_cast %60 : vector<16x128xbf16> to vector<1x16x128xbf16>
    %c0_30 = arith.constant 0 : index
    %c0_31 = arith.constant 0 : index
    %c0_32 = arith.constant 0 : index
    %62 = vector.load %arg12[%c0_30, %c0_31, %c0_32] : memref<1x16x128xbf16, #tpu.memory_space<vmem>>, vector<1x16x128xbf16>
    tpu.vector_store %arg12[%c0_30, %c0_31, %c0_32], %61 {strides = array<i32>} : memref<1x16x128xbf16, #tpu.memory_space<vmem>>, vector<1x16x128xbf16>,
    %63 = tpu.transpose %33, [1, 0] : vector<16x1xf32> -> vector<1x16xf32>
    %64 = tpu.transpose %56, [1, 0] : vector<16x1xf32> -> vector<1x16xf32>
    %c0_33 = arith.constant 0 : index
    %c0_34 = arith.constant 0 : index
    %65 = vector.load %arg18[%c0_33, %c0_34] : memref<1x16xf32, #tpu.memory_space<vmem>>, vector<1x16xf32>
    %66 = math.exp %65 : vector<1x16xf32>
    %67 = arith.mulf %66, %63 : vector<1x16xf32>
    %68 = vector.shape_cast %63 : vector<1x16xf32> to vector<1x1x16xf32>
    %c0_35 = arith.constant 0 : index
    %c0_36 = arith.constant 0 : index
    %c0_37 = arith.constant 0 : index
    %69 = vector.load %arg13[%c0_35, %c0_36, %c0_37] : memref<1x1x16xf32, #tpu.memory_space<vmem>>, vector<1x1x16xf32>
    tpu.vector_store %arg13[%c0_35, %c0_36, %c0_37], %68 {strides = array<i32>} : memref<1x1x16xf32, #tpu.memory_space<vmem>>, vector<1x1x16xf32>,
    %70 = vector.shape_cast %64 : vector<1x16xf32> to vector<1x1x16xf32>
    %c0_38 = arith.constant 0 : index
    %c0_39 = arith.constant 0 : index
    %c0_40 = arith.constant 0 : index
    %71 = vector.load %arg14[%c0_38, %c0_39, %c0_40] : memref<1x1x16xf32, #tpu.memory_space<vmem>>, vector<1x1x16xf32>
    tpu.vector_store %arg14[%c0_38, %c0_39, %c0_40], %70 {strides = array<i32>} : memref<1x1x16xf32, #tpu.memory_space<vmem>>, vector<1x1x16xf32>,
    %72 = vector.shape_cast %67 : vector<1x16xf32> to vector<1x1x16xf32>
    %c0_41 = arith.constant 0 : index
    %c0_42 = arith.constant 0 : index
    %c0_43 = arith.constant 0 : index
    %73 = vector.load %arg15[%c0_41, %c0_42, %c0_43] : memref<1x1x16xf32, #tpu.memory_space<vmem>>, vector<1x1x16xf32>
    tpu.vector_store %arg15[%c0_41, %c0_42, %c0_43], %72 {strides = array<i32>} : memref<1x1x16xf32, #tpu.memory_space<vmem>>, vector<1x1x16xf32>,
    %74 = arith.index_cast %arg1 : i32 to index
    %75 = memref.load %arg10[%74] : memref<14xf32, #tpu.memory_space<smem>>
    %c0_44 = arith.constant 0 : index
    %c0_45 = arith.constant 0 : index
    %76 = vector.load %arg19[%c0_44, %c0_45] : memref<1x16xf32, #tpu.memory_space<vmem>>, vector<1x16xf32>
    %77 = arith.addf %76, %67 : vector<1x16xf32>
    %c0_46 = arith.constant 0 : index
    %c0_47 = arith.constant 0 : index
    %78 = vector.load %arg19[%c0_46, %c0_47] : memref<1x16xf32, #tpu.memory_space<vmem>>, vector<1x16xf32>
    tpu.vector_store %arg19[%c0_46, %c0_47], %77 {strides = array<i32>} : memref<1x16xf32, #tpu.memory_space<vmem>>, vector<1x16xf32>,
    %c0_48 = arith.constant 0 : index
    %c0_49 = arith.constant 0 : index
    %79 = vector.load %arg20[%c0_48, %c0_49] : memref<1x16xf32, #tpu.memory_space<vmem>>, vector<1x16xf32>
    %80 = arith.mulf %64, %67 : vector<1x16xf32>
    %81 = arith.addf %79, %80 : vector<1x16xf32>
    %c0_50 = arith.constant 0 : index
    %c0_51 = arith.constant 0 : index
    %82 = vector.load %arg20[%c0_50, %c0_51] : memref<1x16xf32, #tpu.memory_space<vmem>>, vector<1x16xf32>
    tpu.vector_store %arg20[%c0_50, %c0_51], %81 {strides = array<i32>} : memref<1x16xf32, #tpu.memory_space<vmem>>, vector<1x16xf32>,
    %c0_52 = arith.constant 0 : index
    %c0_53 = arith.constant 0 : index
    %83 = vector.load %arg21[%c0_52, %c0_53] : memref<1x16xf32, #tpu.memory_space<vmem>>, vector<1x16xf32>
    %cst_54 = arith.constant 1.000000e-30 : f32
    %84 = vector.broadcast %cst_54 : f32 to vector<1x16xf32>
    %85 = arith.maximumf %67, %84 : vector<1x16xf32>
    %86 = math.log %85 : vector<1x16xf32>
    %87 = vector.broadcast %75 : f32 to vector<1x16xf32>
    %88 = arith.subf %86, %87 : vector<1x16xf32>
    %89 = arith.mulf %67, %88 : vector<1x16xf32>
    %90 = arith.addf %83, %89 : vector<1x16xf32>
    %c0_55 = arith.constant 0 : index
    %c0_56 = arith.constant 0 : index
    %91 = vector.load %arg21[%c0_55, %c0_56] : memref<1x16xf32, #tpu.memory_space<vmem>>, vector<1x16xf32>
    tpu.vector_store %arg21[%c0_55, %c0_56], %90 {strides = array<i32>} : memref<1x16xf32, #tpu.memory_space<vmem>>, vector<1x16xf32>,
    %c0_57 = arith.constant 0 : index
    %c0_58 = arith.constant 0 : index
    %92 = vector.load %arg18[%c0_57, %c0_58] : memref<1x16xf32, #tpu.memory_space<vmem>>, vector<1x16xf32>
    %cst_59 = arith.constant 1.000000e+00 : f32
    %93 = vector.broadcast %cst_59 : f32 to vector<1x16xf32>
    %94 = arith.subf %93, %63 : vector<1x16xf32>
    %cst_60 = arith.constant 1.000000e-10 : f32
    %cst_61 = arith.constant 1.000000e+00 : f32
    %95 = vector.broadcast %cst_60 : f32 to vector<1x16xf32>
    %96 = arith.maximumf %95, %94 : vector<1x16xf32>
    %97 = vector.broadcast %cst_61 : f32 to vector<1x16xf32>
    %98 = arith.minimumf %97, %96 : vector<1x16xf32>
    %99 = math.log %98 : vector<1x16xf32>
    %100 = arith.addf %92, %99 : vector<1x16xf32>
    %c0_62 = arith.constant 0 : index
    %c0_63 = arith.constant 0 : index
    %101 = vector.load %arg18[%c0_62, %c0_63] : memref<1x16xf32, #tpu.memory_space<vmem>>, vector<1x16xf32>
    tpu.vector_store %arg18[%c0_62, %c0_63], %100 {strides = array<i32>} : memref<1x16xf32, #tpu.memory_space<vmem>>, vector<1x16xf32>,
    %c13_i32 = arith.constant 13 : i32
    %102 = arith.cmpi eq, %arg1, %c13_i32 : i32
    %103 = arith.extui %102 : i1 to i32
    %c0_i32_64 = arith.constant 0 : i32
    %104 = arith.cmpi ne, %103, %c0_i32_64 : i32
    scf.if %104 {
      %c0_65 = arith.constant 0 : index
      %c0_66 = arith.constant 0 : index
      %105 = vector.load %arg19[%c0_65, %c0_66] : memref<1x16xf32, #tpu.memory_space<vmem>>, vector<1x16xf32>
      %cst_67 = arith.constant 1.000000e-30 : f32
      %106 = vector.broadcast %cst_67 : f32 to vector<1x16xf32>
      %107 = arith.maximumf %105, %106 : vector<1x16xf32>
      %c0_68 = arith.constant 0 : index
      %c0_69 = arith.constant 0 : index
      %108 = vector.load %arg20[%c0_68, %c0_69] : memref<1x16xf32, #tpu.memory_space<vmem>>, vector<1x16xf32>
      %109 = arith.divf %108, %107 : vector<1x16xf32>
      %c0_70 = arith.constant 0 : index
      %c0_71 = arith.constant 0 : index
      %110 = vector.load %arg21[%c0_70, %c0_71] : memref<1x16xf32, #tpu.memory_space<vmem>>, vector<1x16xf32>
      %111 = arith.divf %110, %107 : vector<1x16xf32>
      %112 = math.log %107 : vector<1x16xf32>
      %113 = arith.subf %111, %112 : vector<1x16xf32>
      %114 = vector.shape_cast %109 : vector<1x16xf32> to vector<1x1x16xf32>
      %cst_72 = arith.constant dense<0.000000e+00> : vector<1xf32>
      %115 = vector.multi_reduction <add>, %114, %cst_72 [1, 2] : vector<1x1x16xf32> to vector<1xf32>
      %116 = vector.shape_cast %115 : vector<1xf32> to vector<1x1x1xf32>
      %117 = vector.extract %116[0, 0, 0] : f32 from vector<1x1x1xf32>
      %118 = vector.shape_cast %113 : vector<1x16xf32> to vector<1x1x16xf32>
      %cst_73 = arith.constant dense<0.000000e+00> : vector<1xf32>
      %119 = vector.multi_reduction <add>, %118, %cst_73 [1, 2] : vector<1x1x16xf32> to vector<1xf32>
      %120 = vector.shape_cast %119 : vector<1xf32> to vector<1x1x1xf32>
      %121 = vector.extract %120[0, 0, 0] : f32 from vector<1x1x1xf32>
      %122 = tpu.iota {dimensions = array<i32: 0>} : vector<8x128xi32>
      %123 = tpu.iota {dimensions = array<i32: 1>} : vector<8x128xi32>
      %c0_i32_74 = arith.constant 0 : i32
      %124 = vector.broadcast %c0_i32_74 : i32 to vector<8x128xi32>
      %125 = arith.cmpi eq, %122, %124 : vector<8x128xi32>
      %c0_i32_75 = arith.constant 0 : i32
      %126 = vector.broadcast %c0_i32_75 : i32 to vector<8x128xi32>
      %127 = arith.cmpi eq, %123, %126 : vector<8x128xi32>
      %128 = arith.andi %125, %127 : vector<8x128xi1>
      %cst_76 = arith.constant 0.000000e+00 : f32
      %129 = vector.broadcast %117 : f32 to vector<8x128xf32>
      %130 = vector.broadcast %cst_76 : f32 to vector<8x128xf32>
      %131 = arith.select %128, %129, %130 : vector<8x128xi1>, vector<8x128xf32>
      %c0_i32_77 = arith.constant 0 : i32
      %132 = vector.broadcast %c0_i32_77 : i32 to vector<8x128xi32>
      %133 = arith.cmpi eq, %122, %132 : vector<8x128xi32>
      %c1_i32 = arith.constant 1 : i32
      %134 = vector.broadcast %c1_i32 : i32 to vector<8x128xi32>
      %135 = arith.cmpi eq, %123, %134 : vector<8x128xi32>
      %136 = arith.andi %133, %135 : vector<8x128xi1>
      %cst_78 = arith.constant 0.000000e+00 : f32
      %137 = vector.broadcast %121 : f32 to vector<8x128xf32>
      %138 = vector.broadcast %cst_78 : f32 to vector<8x128xf32>
      %139 = arith.select %136, %137, %138 : vector<8x128xi1>, vector<8x128xf32>
      %140 = arith.addf %131, %139 : vector<8x128xf32>
      %141 = vector.shape_cast %140 : vector<8x128xf32> to vector<1x8x128xf32>
      %c0_79 = arith.constant 0 : index
      %c0_80 = arith.constant 0 : index
      %c0_81 = arith.constant 0 : index
      %142 = vector.load %arg16[%c0_79, %c0_80, %c0_81] : memref<1x8x128xf32, #tpu.memory_space<vmem>>, vector<1x8x128xf32>
      tpu.vector_store %arg16[%c0_79, %c0_80, %c0_81], %141 {strides = array<i32>} : memref<1x8x128xf32, #tpu.memory_space<vmem>>, vector<1x8x128xf32>,
    } else {
    }
    return
  }
  func.func @transform_0(%arg0: i32, %arg1: i32) -> (i32, i32) {
    %c0_i32 = arith.constant 0 : i32
    %c0_i32_0 = arith.constant 0 : i32
    return %arg0, %c0_i32 : i32, i32
  }
  func.func @transform_1(%arg0: i32, %arg1: i32) -> (i32, i32) {
    %c0_i32 = arith.constant 0 : i32
    %c0_i32_0 = arith.constant 0 : i32
    return %arg0, %c0_i32 : i32, i32
  }
  func.func @transform_2(%arg0: i32, %arg1: i32) -> (i32, i32) {
    %c0_i32 = arith.constant 0 : i32
    %c0_i32_0 = arith.constant 0 : i32
    %c0_i32_1 = arith.constant 0 : i32
    return %c0_i32, %c0_i32_0 : i32, i32
  }
  func.func @transform_3(%arg0: i32, %arg1: i32) -> (i32, i32) {
    %c0_i32 = arith.constant 0 : i32
    %c0_i32_0 = arith.constant 0 : i32
    %c0_i32_1 = arith.constant 0 : i32
    return %c0_i32, %c0_i32_0 : i32, i32
  }
  func.func @transform_4(%arg0: i32, %arg1: i32) -> (i32, i32) {
    %c0_i32 = arith.constant 0 : i32
    %c0_i32_0 = arith.constant 0 : i32
    %c0_i32_1 = arith.constant 0 : i32
    return %c0_i32, %c0_i32_0 : i32, i32
  }
  func.func @transform_5(%arg0: i32, %arg1: i32) -> (i32, i32) {
    %c0_i32 = arith.constant 0 : i32
    %c0_i32_0 = arith.constant 0 : i32
    %c0_i32_1 = arith.constant 0 : i32
    return %c0_i32, %c0_i32_0 : i32, i32
  }
  func.func @transform_6(%arg0: i32, %arg1: i32) -> (i32, i32) {
    %c0_i32 = arith.constant 0 : i32
    %c0_i32_0 = arith.constant 0 : i32
    %c0_i32_1 = arith.constant 0 : i32
    return %c0_i32, %c0_i32_0 : i32, i32
  }
  func.func @transform_7(%arg0: i32, %arg1: i32) -> (i32, i32) {
    %c0_i32 = arith.constant 0 : i32
    %c0_i32_0 = arith.constant 0 : i32
    %c0_i32_1 = arith.constant 0 : i32
    return %c0_i32, %c0_i32_0 : i32, i32
  }
  func.func @transform_8(%arg0: i32, %arg1: i32) -> i32 {
    %c0_i32 = arith.constant 0 : i32
    %c0_i32_0 = arith.constant 0 : i32
    return %c0_i32 : i32
  }
  func.func @transform_9(%arg0: i32, %arg1: i32) -> (i32, i32, i32) {
    %c0_i32 = arith.constant 0 : i32
    %c0_i32_0 = arith.constant 0 : i32
    return %arg1, %arg0, %c0_i32 : i32, i32, i32
  }
  func.func @transform_10(%arg0: i32, %arg1: i32) -> (i32, i32, i32) {
    %c0_i32 = arith.constant 0 : i32
    %c0_i32_0 = arith.constant 0 : i32
    return %arg1, %arg0, %c0_i32 : i32, i32, i32
  }
  func.func @transform_11(%arg0: i32, %arg1: i32) -> (i32, i32, i32) {
    %c0_i32 = arith.constant 0 : i32
    %c0_i32_0 = arith.constant 0 : i32
    return %arg1, %c0_i32, %arg0 : i32, i32, i32
  }
  func.func @transform_12(%arg0: i32, %arg1: i32) -> (i32, i32, i32) {
    %c0_i32 = arith.constant 0 : i32
    %c0_i32_0 = arith.constant 0 : i32
    return %arg1, %c0_i32, %arg0 : i32, i32, i32
  }
  func.func @transform_13(%arg0: i32, %arg1: i32) -> (i32, i32, i32) {
    %c0_i32 = arith.constant 0 : i32
    %c0_i32_0 = arith.constant 0 : i32
    return %arg1, %c0_i32, %arg0 : i32, i32, i32
  }
  func.func @transform_14(%arg0: i32, %arg1: i32) -> (i32, i32, i32) {
    %c0_i32 = arith.constant 0 : i32
    %c0_i32_0 = arith.constant 0 : i32
    %c0_i32_1 = arith.constant 0 : i32
    return %arg0, %c0_i32, %c0_i32_0 : i32, i32, i32
  }
}

</mosaic_0001>

<llo_original>
// kernel: tpu_custom_call.1
$region0: #{tpu_custom_call.1}
  #allocation0 [shape = 'u32[]', space=smem, size = 0x4, offset = 0x4, fixed_abs, tag = 'smem constant byte address 0x4 - core index']
  #allocation1 [shape = 'u32[144,128]{1,0:T(1,128)}', space=vmem, size = 0x12000, scoped, tag = 'internal scratch']
  #allocation2 [shape = 'f32[16,32]{1,0:T(8,128)}', space=vmem, size = 0x2000, scoped, tag = 'scratch operand']
  #allocation3 [shape = 'f32[1,16]{1,0:T(1,128)}', space=vmem, size = 0x200, scoped, tag = 'scratch operand']
  #allocation4 [shape = 'f32[1,16]{1,0:T(1,128)}', space=vmem, size = 0x200, scoped, tag = 'scratch operand']
  #allocation5 [shape = 'f32[1,16]{1,0:T(1,128)}', space=vmem, size = 0x200, scoped, tag = 'scratch operand']
  #allocation6 [shape = 'f32[1,16]{1,0:T(1,128)}', space=vmem, size = 0x200, scoped, tag = 'scratch operand']
  %s0 = inlined_call_operand.vmem [shape: s32[16,1], index: 0, kind: input, shape index: {}]
  %s1 = inlined_call_operand.vmem [shape: f32[16,32], index: 1, kind: input, shape index: {}]
  %s2 = inlined_call_operand.vmem [shape: bf16[32,64], index: 2, kind: input, shape index: {}]
  %s3 = inlined_call_operand.hbm [shape: f32[1,64], index: 3, kind: input, shape index: {}]
  %s4 = inlined_call_operand.vmem [shape: bf16[64,32], index: 4, kind: input, shape index: {}]
  %s5 = inlined_call_operand.vmem [shape: f32[1,32], index: 5, kind: input, shape index: {}]
  %s6 = inlined_call_operand.vmem [shape: bf16[32,256], index: 6, kind: input, shape index: {}]
  %s7 = inlined_call_operand.vmem [shape: f32[1,256], index: 7, kind: input, shape index: {}]
  %s8 = inlined_call_operand.vmem [shape: f32[14], index: 8, kind: input, shape index: {}]
  %s9 = inlined_call_operand.hbm [shape: bf16[14,16,32], index: 9, kind: output, shape index: {0}]
  %s10 = inlined_call_operand.hbm [shape: bf16[14,16,128], index: 10, kind: output, shape index: {1}]
  %s11 = inlined_call_operand.hbm [shape: f32[14,1,16], index: 11, kind: output, shape index: {2}]
  %s12 = inlined_call_operand.hbm [shape: f32[14,1,16], index: 12, kind: output, shape index: {3}]
  %s13 = inlined_call_operand.hbm [shape: f32[14,1,16], index: 13, kind: output, shape index: {4}]
  %s14 = inlined_call_operand.hbm [shape: f32[1,8,128], index: 14, kind: output, shape index: {5}]
  %15 = xla_tuple %s9, %s10, %s11, %s12, %s13, %s14
  %s16 = sld [smem:[#allocation0]]
  $region125: #{tpu_custom_call.1} parent=0
    _
  %s18 = ssub.s32 1, %s16
  %s19 = scalar_select 0, %s18, %s16
  $region1: #{tpu_custom_call.1} parent=0
    #allocation7 [shape = 'u8[512]{0}', space=vmem, size = 0x400, scoped, tag = 'input window, operand 3, single buffered']
    #allocation8 [shape = 's32[2]{0}', space=sflag, size = 0x8, scoped, tag = 'scoped memory for tpu_custom_call.1']
    #allocation9 [shape = 's32[2]{0}', space=sflag, size = 0x8, scoped, tag = 'scoped memory for tpu_custom_call.1']
    #allocation10 [shape = 's32[2]{0}', space=sflag, size = 0x8, scoped, tag = 'scoped memory for tpu_custom_call.1']
    #allocation11 [shape = 'u8[512]{0}', space=smem, size = 0x200, scoped, tag = 'input window, operand 8, single buffered']
    #allocation12 [shape = 'u8[8192]{0}', space=vmem, size = 0x2000, scoped, tag = 'output window, operand 0']
    #allocation13 [shape = 'u8[8192]{0}', space=vmem, size = 0x2000, scoped, tag = 'output window, operand 1']
    #allocation14 [shape = 's32[2]{0}', space=sflag, size = 0x8, scoped, tag = 'scoped memory for tpu_custom_call.1']
    #allocation15 [shape = 'u8[1024]{0}', space=vmem, size = 0x400, scoped, tag = 'output window, operand 2']
    #allocation16 [shape = 'u8[1024]{0}', space=vmem, size = 0x400, scoped, tag = 'output window, operand 3']
    #allocation17 [shape = 's32[2]{0}', space=sflag, size = 0x8, scoped, tag = 'scoped memory for tpu_custom_call.1']
    #allocation18 [shape = 'u8[1024]{0}', space=vmem, size = 0x400, scoped, tag = 'output window, operand 4']
    #allocation19 [shape = 'u8[4096]{0}', space=vmem, size = 0x1000, scoped, tag = 'output window, operand 5, single buffered']
    #allocation20 [shape = 's32[1]{0}', space=sflag, size = 0x4, scoped, tag = 'scoped memory for tpu_custom_call.1']
    %20 = vsyncpa [#allocation8], 0
    %21 = vsyncpa [#allocation10], 0
    %22 = vsyncpa [#allocation9], 0
    %s23 = scalar_lea.sflag [#allocation9], 1
    %24 = vsyncpa %s23, 0
    %25 = vsyncpa [#allocation14], 0
    %s26 = scalar_lea.sflag [#allocation14], 1
    %27 = vsyncpa %s26, 0
    %28 = vsyncpa [#allocation17], 0
    %s29 = scalar_lea.sflag [#allocation17], 1
    %30 = vsyncpa %s29, 0
    %31 = vsyncpa [#allocation20], 0
    loop: start=0, step=1, limit=16
    $region2: #{tpu_custom_call.1} parent=1 // loop_pre_header
      _
    $region3: #{tpu_custom_call.1} parent=1 // loop_header
      %s33 = sphi 0, %s37
      %p34 = scmp.ge.s32.totalorder %s33, 16
      %s40 = sphi 0, %s52
      %s41 = sphi 0, %s48
      %s42 = sphi 0, %s40
      %s43 = sphi 0, %s41
      %s44 = sphi 0, %s42
      %s45 = sphi 0, %s43
      %s55 = sphi 0, %s57
      %s58 = sphi 0, %s55
      %s59 = sphi 0, %s58
      %s75 = sphi 0, %s59
      %s81 = sphi 0, %s83
      %s84 = sphi 0, %s81
      %s85 = sphi 0, %s84
      %s101 = sphi 0, %s85
      %s105 = sphi 0, %s105
      %s107 = sphi 0, %s105
      %s108 = sphi 0, %s107
      %s122 = sphi 0, %s108
      %s126 = sphi 0, %s126
      %s128 = sphi 0, %s126
      %s129 = sphi 0, %s128
      %s143 = sphi 0, %s129
      %s147 = sphi 0, %s147
      %s149 = sphi 0, %s147
      %s150 = sphi 0, %s149
      %s164 = sphi 0, %s150
      %s168 = sphi 0, %s168
      %s170 = sphi 0, %s168
      %s171 = sphi 0, %s170
      %s185 = sphi 0, %s171
      %s189 = sphi 0, %s189
      %s191 = sphi 0, %s189
      %s192 = sphi 0, %s191
      %s206 = sphi 0, %s192
      %s210 = sphi 0, %s210
      %s212 = sphi 0, %s210
      %s213 = sphi 0, %s212
      %s227 = sphi 0, %s213
      %s231 = sphi 0, %s231
      %s233 = sphi 0, %s231
      %s234 = sphi 0, %s233
      %s248 = sphi 0, %s234
      %s256 = sphi 0, %s258
      %s259 = sphi 0, %s256
      %s260 = sphi 0, %s259
      %s276 = sphi 0, %s260
      %s284 = sphi 0, %s286
      %s287 = sphi 0, %s284
      %s288 = sphi 0, %s287
      %s304 = sphi 0, %s288
      %s312 = sphi 0, %s314
      %s315 = sphi 0, %s312
      %s316 = sphi 0, %s315
      %s332 = sphi 0, %s316
      %s340 = sphi 0, %s342
      %s343 = sphi 0, %s340
      %s344 = sphi 0, %s343
      %s360 = sphi 0, %s344
      %s368 = sphi 0, %s370
      %s371 = sphi 0, %s368
      %s372 = sphi 0, %s371
      %s388 = sphi 0, %s372
      %s394 = sphi 0, %s396
      %s397 = sphi 0, %s394
      %s398 = sphi 0, %s397
      %s414 = sphi 0, %s398
    $region4: #{tpu_custom_call.1} parent=1 // loop_header_branch
      %36 = sbr.rel (%p34) target = $region8
    $region5: #{tpu_custom_call.1} parent=1 // loop_body
      %s38 = ssub.s32 %s33, 1
      %s39 = ssub.s32 %s33, 2
      %s46 = sadd.s32 1, %s41
      %p47 = scmp.ge.s32.totalorder %s46, 14
      %s48 = scalar_select %p47, 0, %s46
      %s49 = sadd.s32 1, %s40
      %s50 = scalar_select %p47, %s49, %s40
      %p51 = scmp.ge.s32.totalorder %s50, 1
      %s52 = scalar_select %p51, 0, %s50
      %s53 = ssub.s32 %s40, %s52
      %p54 = scmp.eq.s32.totalorder %s53, 0
      %s56 = sadd.s32 %s55, 1
      %s57 = scalar_select %p54, %s55, %s56
      %p60 = pneg %p54
      %p61 = scmp.eq.s32.totalorder %s33, 13
      %p62 = por %p60, %p61
      %p63 = scmp.ne.s32.totalorder %s55, %s58
      %p64 = scmp.eq.s32.totalorder %s33, 0
      %p65 = por %p63, %p64
      %p66 = scmp.ne.s32.totalorder %s55, %s58
      %p67 = scmp.eq.s32.totalorder %s38, 13
      %p68 = por %p66, %p67
      %p69 = scmp.ne.s32.totalorder %s58, %s59
      %p70 = scmp.eq.s32.totalorder %s38, 0
      %p71 = por %p69, %p70
      %p72 = scmp.ne.s32.totalorder %s58, %s59
      %p73 = scmp.eq.s32.totalorder %s39, 13
      %p74 = por %p72, %p73
      %p76 = scmp.ne.s32.totalorder %s59, %s75
      %p77 = scmp.eq.s32.totalorder %s39, 0
      %p78 = por %p76, %p77
      %s79 = ssub.s32 %s40, %s52
      %p80 = scmp.eq.s32.totalorder %s79, 0
      %s82 = sadd.s32 %s81, 1
      %s83 = scalar_select %p80, %s81, %s82
      %p86 = pneg %p80
      %p87 = scmp.eq.s32.totalorder %s33, 13
      %p88 = por %p86, %p87
      %p89 = scmp.ne.s32.totalorder %s81, %s84
      %p90 = scmp.eq.s32.totalorder %s33, 0
      %p91 = por %p89, %p90
      %p92 = scmp.ne.s32.totalorder %s81, %s84
      %p93 = scmp.eq.s32.totalorder %s38, 13
      %p94 = por %p92, %p93
      %p95 = scmp.ne.s32.totalorder %s84, %s85
      %p96 = scmp.eq.s32.totalorder %s38, 0
      %p97 = por %p95, %p96
      %p98 = scmp.ne.s32.totalorder %s84, %s85
      %p99 = scmp.eq.s32.totalorder %s39, 13
      %p100 = por %p98, %p99
      %p102 = scmp.ne.s32.totalorder %s85, %s101
      %p103 = scmp.eq.s32.totalorder %s39, 0
      %p104 = por %p102, %p103
      %s106 = sadd.s32 %s105, 1
      %p109 = scmp.eq.s32.totalorder %s33, 13
      %p110 = scmp.ne.s32.totalorder %s105, %s107
      %p111 = scmp.eq.s32.totalorder %s33, 0
      %p112 = por %p110, %p111
      %p113 = scmp.ne.s32.totalorder %s105, %s107
      %p114 = scmp.eq.s32.totalorder %s38, 13
      %p115 = por %p113, %p114
      %p116 = scmp.ne.s32.totalorder %s107, %s108
      %p117 = scmp.eq.s32.totalorder %s38, 0
      %p118 = por %p116, %p117
      %p119 = scmp.ne.s32.totalorder %s107, %s108
      %p120 = scmp.eq.s32.totalorder %s39, 13
      %p121 = por %p119, %p120
      %p123 = scmp.ne.s32.totalorder %s108, %s122
      %p124 = scmp.eq.s32.totalorder %s39, 0
      %p125 = por %p123, %p124
      %s127 = sadd.s32 %s126, 1
      %p130 = scmp.eq.s32.totalorder %s33, 13
      %p131 = scmp.ne.s32.totalorder %s126, %s128
      %p132 = scmp.eq.s32.totalorder %s33, 0
      %p133 = por %p131, %p132
      %p134 = scmp.ne.s32.totalorder %s126, %s128
      %p135 = scmp.eq.s32.totalorder %s38, 13
      %p136 = por %p134, %p135
      %p137 = scmp.ne.s32.totalorder %s128, %s129
      %p138 = scmp.eq.s32.totalorder %s38, 0
      %p139 = por %p137, %p138
      %p140 = scmp.ne.s32.totalorder %s128, %s129
      %p141 = scmp.eq.s32.totalorder %s39, 13
      %p142 = por %p140, %p141
      %p144 = scmp.ne.s32.totalorder %s129, %s143
      %p145 = scmp.eq.s32.totalorder %s39, 0
      %p146 = por %p144, %p145
      %s148 = sadd.s32 %s147, 1
      %p151 = scmp.eq.s32.totalorder %s33, 13
      %p152 = scmp.ne.s32.totalorder %s147, %s149
      %p153 = scmp.eq.s32.totalorder %s33, 0
      %p154 = por %p152, %p153
      %p155 = scmp.ne.s32.totalorder %s147, %s149
      %p156 = scmp.eq.s32.totalorder %s38, 13
      %p157 = por %p155, %p156
      %p158 = scmp.ne.s32.totalorder %s149, %s150
      %p159 = scmp.eq.s32.totalorder %s38, 0
      %p160 = por %p158, %p159
      %p161 = scmp.ne.s32.totalorder %s149, %s150
      %p162 = scmp.eq.s32.totalorder %s39, 13
      %p163 = por %p161, %p162
      %p165 = scmp.ne.s32.totalorder %s150, %s164
      %p166 = scmp.eq.s32.totalorder %s39, 0
      %p167 = por %p165, %p166
      %s169 = sadd.s32 %s168, 1
      %p172 = scmp.eq.s32.totalorder %s33, 13
      %p173 = scmp.ne.s32.totalorder %s168, %s170
      %p174 = scmp.eq.s32.totalorder %s33, 0
      %p175 = por %p173, %p174
      %p176 = scmp.ne.s32.totalorder %s168, %s170
      %p177 = scmp.eq.s32.totalorder %s38, 13
      %p178 = por %p176, %p177
      %p179 = scmp.ne.s32.totalorder %s170, %s171
      %p180 = scmp.eq.s32.totalorder %s38, 0
      %p181 = por %p179, %p180
      %p182 = scmp.ne.s32.totalorder %s170, %s171
      %p183 = scmp.eq.s32.totalorder %s39, 13
      %p184 = por %p182, %p183
      %p186 = scmp.ne.s32.totalorder %s171, %s185
      %p187 = scmp.eq.s32.totalorder %s39, 0
      %p188 = por %p186, %p187
      %s190 = sadd.s32 %s189, 1
      %p193 = scmp.eq.s32.totalorder %s33, 13
      %p194 = scmp.ne.s32.totalorder %s189, %s191
      %p195 = scmp.eq.s32.totalorder %s33, 0
      %p196 = por %p194, %p195
      %p197 = scmp.ne.s32.totalorder %s189, %s191
      %p198 = scmp.eq.s32.totalorder %s38, 13
      %p199 = por %p197, %p198
      %p200 = scmp.ne.s32.totalorder %s191, %s192
      %p201 = scmp.eq.s32.totalorder %s38, 0
      %p202 = por %p200, %p201
      %p203 = scmp.ne.s32.totalorder %s191, %s192
      %p204 = scmp.eq.s32.totalorder %s39, 13
      %p205 = por %p203, %p204
      %p207 = scmp.ne.s32.totalorder %s192, %s206
      %p208 = scmp.eq.s32.totalorder %s39, 0
      %p209 = por %p207, %p208
      %s211 = sadd.s32 %s210, 1
      %p214 = scmp.eq.s32.totalorder %s33, 13
      %p215 = scmp.ne.s32.totalorder %s210, %s212
      %p216 = scmp.eq.s32.totalorder %s33, 0
      %p217 = por %p215, %p216
      %p218 = scmp.ne.s32.totalorder %s210, %s212
      %p219 = scmp.eq.s32.totalorder %s38, 13
      %p220 = por %p218, %p219
      %p221 = scmp.ne.s32.totalorder %s212, %s213
      %p222 = scmp.eq.s32.totalorder %s38, 0
      %p223 = por %p221, %p222
      %p224 = scmp.ne.s32.totalorder %s212, %s213
      %p225 = scmp.eq.s32.totalorder %s39, 13
      %p226 = por %p224, %p225
      %p228 = scmp.ne.s32.totalorder %s213, %s227
      %p229 = scmp.eq.s32.totalorder %s39, 0
      %p230 = por %p228, %p229
      %s232 = sadd.s32 %s231, 1
      %p235 = scmp.eq.s32.totalorder %s33, 13
      %p236 = scmp.ne.s32.totalorder %s231, %s233
      %p237 = scmp.eq.s32.totalorder %s33, 0
      %p238 = por %p236, %p237
      %p239 = scmp.ne.s32.totalorder %s231, %s233
      %p240 = scmp.eq.s32.totalorder %s38, 13
      %p241 = por %p239, %p240
      %p242 = scmp.ne.s32.totalorder %s233, %s234
      %p243 = scmp.eq.s32.totalorder %s38, 0
      %p244 = por %p242, %p243
      %p245 = scmp.ne.s32.totalorder %s233, %s234
      %p246 = scmp.eq.s32.totalorder %s39, 13
      %p247 = por %p245, %p246
      %p249 = scmp.ne.s32.totalorder %s234, %s248
      %p250 = scmp.eq.s32.totalorder %s39, 0
      %p251 = por %p249, %p250
      %s252 = ssub.s32 %s41, %s48
      %s253 = ssub.s32 %s40, %s52
      %s254 = sor.u32 %s252, %s253
      %p255 = scmp.eq.s32.totalorder %s254, 0
      %s257 = sadd.s32 %s256, 1
      %s258 = scalar_select %p255, %s256, %s257
      %p261 = pneg %p255
      %p262 = scmp.eq.s32.totalorder %s33, 13
      %p263 = por %p261, %p262
      %p264 = scmp.ne.s32.totalorder %s256, %s259
      %p265 = scmp.eq.s32.totalorder %s33, 0
      %p266 = por %p264, %p265
      %p267 = scmp.ne.s32.totalorder %s256, %s259
      %p268 = scmp.eq.s32.totalorder %s38, 13
      %p269 = por %p267, %p268
      %p270 = scmp.ne.s32.totalorder %s259, %s260
      %p271 = scmp.eq.s32.totalorder %s38, 0
      %p272 = por %p270, %p271
      %p273 = scmp.ne.s32.totalorder %s259, %s260
      %p274 = scmp.eq.s32.totalorder %s39, 13
      %p275 = por %p273, %p274
      %p277 = scmp.ne.s32.totalorder %s260, %s276
      %p278 = scmp.eq.s32.totalorder %s39, 0
      %p279 = por %p277, %p278
      %s280 = ssub.s32 %s41, %s48
      %s281 = ssub.s32 %s40, %s52
      %s282 = sor.u32 %s280, %s281
      %p283 = scmp.eq.s32.totalorder %s282, 0
      %s285 = sadd.s32 %s284, 1
      %s286 = scalar_select %p283, %s284, %s285
      %p289 = pneg %p283
      %p290 = scmp.eq.s32.totalorder %s33, 13
      %p291 = por %p289, %p290
      %p292 = scmp.ne.s32.totalorder %s284, %s287
      %p293 = scmp.eq.s32.totalorder %s33, 0
      %p294 = por %p292, %p293
      %p295 = scmp.ne.s32.totalorder %s284, %s287
      %p296 = scmp.eq.s32.totalorder %s38, 13
      %p297 = por %p295, %p296
      %p298 = scmp.ne.s32.totalorder %s287, %s288
      %p299 = scmp.eq.s32.totalorder %s38, 0
      %p300 = por %p298, %p299
      %p301 = scmp.ne.s32.totalorder %s287, %s288
      %p302 = scmp.eq.s32.totalorder %s39, 13
      %p303 = por %p301, %p302
      %p305 = scmp.ne.s32.totalorder %s288, %s304
      %p306 = scmp.eq.s32.totalorder %s39, 0
      %p307 = por %p305, %p306
      %s308 = ssub.s32 %s41, %s48
      %s309 = ssub.s32 %s40, %s52
      %s310 = sor.u32 %s308, %s309
      %p311 = scmp.eq.s32.totalorder %s310, 0
      %s313 = sadd.s32 %s312, 1
      %s314 = scalar_select %p311, %s312, %s313
      %p317 = pneg %p311
      %p318 = scmp.eq.s32.totalorder %s33, 13
      %p319 = por %p317, %p318
      %p320 = scmp.ne.s32.totalorder %s312, %s315
      %p321 = scmp.eq.s32.totalorder %s33, 0
      %p322 = por %p320, %p321
      %p323 = scmp.ne.s32.totalorder %s312, %s315
      %p324 = scmp.eq.s32.totalorder %s38, 13
      %p325 = por %p323, %p324
      %p326 = scmp.ne.s32.totalorder %s315, %s316
      %p327 = scmp.eq.s32.totalorder %s38, 0
      %p328 = por %p326, %p327
      %p329 = scmp.ne.s32.totalorder %s315, %s316
      %p330 = scmp.eq.s32.totalorder %s39, 13
      %p331 = por %p329, %p330
      %p333 = scmp.ne.s32.totalorder %s316, %s332
      %p334 = scmp.eq.s32.totalorder %s39, 0
      %p335 = por %p333, %p334
      %s336 = ssub.s32 %s41, %s48
      %s337 = ssub.s32 %s40, %s52
      %s338 = sor.u32 %s336, %s337
      %p339 = scmp.eq.s32.totalorder %s338, 0
      %s341 = sadd.s32 %s340, 1
      %s342 = scalar_select %p339, %s340, %s341
      %p345 = pneg %p339
      %p346 = scmp.eq.s32.totalorder %s33, 13
      %p347 = por %p345, %p346
      %p348 = scmp.ne.s32.totalorder %s340, %s343
      %p349 = scmp.eq.s32.totalorder %s33, 0
      %p350 = por %p348, %p349
      %p351 = scmp.ne.s32.totalorder %s340, %s343
      %p352 = scmp.eq.s32.totalorder %s38, 13
      %p353 = por %p351, %p352
      %p354 = scmp.ne.s32.totalorder %s343, %s344
      %p355 = scmp.eq.s32.totalorder %s38, 0
      %p356 = por %p354, %p355
      %p357 = scmp.ne.s32.totalorder %s343, %s344
      %p358 = scmp.eq.s32.totalorder %s39, 13
      %p359 = por %p357, %p358
      %p361 = scmp.ne.s32.totalorder %s344, %s360
      %p362 = scmp.eq.s32.totalorder %s39, 0
      %p363 = por %p361, %p362
      %s364 = ssub.s32 %s41, %s48
      %s365 = ssub.s32 %s40, %s52
      %s366 = sor.u32 %s364, %s365
      %p367 = scmp.eq.s32.totalorder %s366, 0
      %s369 = sadd.s32 %s368, 1
      %s370 = scalar_select %p367, %s368, %s369
      %p373 = pneg %p367
      %p374 = scmp.eq.s32.totalorder %s33, 13
      %p375 = por %p373, %p374
      %p376 = scmp.ne.s32.totalorder %s368, %s371
      %p377 = scmp.eq.s32.totalorder %s33, 0
      %p378 = por %p376, %p377
      %p379 = scmp.ne.s32.totalorder %s368, %s371
      %p380 = scmp.eq.s32.totalorder %s38, 13
      %p381 = por %p379, %p380
      %p382 = scmp.ne.s32.totalorder %s371, %s372
      %p383 = scmp.eq.s32.totalorder %s38, 0
      %p384 = por %p382, %p383
      %p385 = scmp.ne.s32.totalorder %s371, %s372
      %p386 = scmp.eq.s32.totalorder %s39, 13
      %p387 = por %p385, %p386
      %p389 = scmp.ne.s32.totalorder %s372, %s388
      %p390 = scmp.eq.s32.totalorder %s39, 0
      %p391 = por %p389, %p390
      %s392 = ssub.s32 %s40, %s52
      %p393 = scmp.eq.s32.totalorder %s392, 0
      %s395 = sadd.s32 %s394, 1
      %s396 = scalar_select %p393, %s394, %s395
      %p399 = pneg %p393
      %p400 = scmp.eq.s32.totalorder %s33, 13
      %p401 = por %p399, %p400
      %p402 = scmp.ne.s32.totalorder %s394, %s397
      %p403 = scmp.eq.s32.totalorder %s33, 0
      %p404 = por %p402, %p403
      %p405 = scmp.ne.s32.totalorder %s394, %s397
      %p406 = scmp.eq.s32.totalorder %s38, 13
      %p407 = por %p405, %p406
      %p408 = scmp.ne.s32.totalorder %s397, %s398
      %p409 = scmp.eq.s32.totalorder %s38, 0
      %p410 = por %p408, %p409
      %p411 = scmp.ne.s32.totalorder %s397, %s398
      %p412 = scmp.eq.s32.totalorder %s39, 13
      %p413 = por %p411, %p412
      %p415 = scmp.ne.s32.totalorder %s398, %s414
      %p416 = scmp.eq.s32.totalorder %s39, 0
      %p417 = por %p415, %p416
      %p418 = scmp.le.s32.totalorder 1, %s33
      %p419 = scmp.lt.s32.totalorder %s33, 15
      %p420 = pnand %p418, %p419
      %p421 = pneg %p420
      // Predicated region
      $region9: #{tpu_custom_call.1} parent=5 // pred_check
        _
      $region10: #{tpu_custom_call.1} parent=5 // pred_check_branch
        %423 = sbr.rel (%p420) target = $region12
      $region11: #{tpu_custom_call.1} parent=5 // pred_region
        %s424 = ssub.s32 %s33, 1
        // Predicated region
        $region13: #{tpu_custom_call.1} parent=11 // pred_check
          %p425 = pneg %p71
        $region14: #{tpu_custom_call.1} parent=11 // pred_check_branch
          %427 = sbr.rel (%p425) target = $region16
        $region15: #{tpu_custom_call.1} parent=11 // pred_region
          %s428 = smul.u32 2, %s42
          %p429 = scmp.lt.s32.totalorder %s428, 1
          %s430 = scalar_select %p429, %s428, 1
          %s431 = smul.addr %s430, 8
          %s432 = scalar_lea.vmem %s0, %s431
          %s433 = smul.u32 2, %s42
        $region16: #{tpu_custom_call.1} parent=11 // pred_fallthru
          _
        // Predicated region
        $region17: #{tpu_custom_call.1} parent=11 // pred_check
          %p434 = pneg %p97
        $region18: #{tpu_custom_call.1} parent=11 // pred_check_branch
          %436 = sbr.rel (%p434) target = $region20
        $region19: #{tpu_custom_call.1} parent=11 // pred_region
          %s437 = smul.u32 2, %s42
          %p438 = scmp.lt.s32.totalorder %s437, 1
          %s439 = scalar_select %p438, %s437, 1
          %s440 = smul.addr %s439, 8
          %s441 = scalar_lea.vmem %s1, %s440
          %s442 = smul.u32 2, %s42
        $region20: #{tpu_custom_call.1} parent=11 // pred_fallthru
          _
        // Predicated region
        $region21: #{tpu_custom_call.1} parent=11 // pred_check
          %p443 = pneg %p118
        $region22: #{tpu_custom_call.1} parent=11 // pred_check_branch
          %445 = sbr.rel (%p443) target = $region24
        $region23: #{tpu_custom_call.1} parent=11 // pred_region
          _
        $region24: #{tpu_custom_call.1} parent=11 // pred_fallthru
          _
        // Predicated region
        $region25: #{tpu_custom_call.1} parent=11 // pred_check
          %p446 = pneg %p139
        $region26: #{tpu_custom_call.1} parent=11 // pred_check_branch
          %448 = sbr.rel (%p446) target = $region28
        $region27: #{tpu_custom_call.1} parent=11 // pred_region
          %s450 = ssub.s32 16, 16
          %451 = vsyncadd [#allocation8], %s450
          %s453 = sshll.u32 [#allocation7], 4
          %s454 = int_to_ptr.vmem [resolvable:$true] %s453
          %456 = dma.hbm_to_vmem [thread:$0]  %s3, 16, %s454, [#allocation8]
        $region28: #{tpu_custom_call.1} parent=11 // pred_fallthru
          _
        // Predicated region
        $region29: #{tpu_custom_call.1} parent=11 // pred_check
          %p457 = pneg %p160
        $region30: #{tpu_custom_call.1} parent=11 // pred_check_branch
          %459 = sbr.rel (%p457) target = $region32
        $region31: #{tpu_custom_call.1} parent=11 // pred_region
          _
        $region32: #{tpu_custom_call.1} parent=11 // pred_fallthru
          _
        // Predicated region
        $region33: #{tpu_custom_call.1} parent=11 // pred_check
          %p460 = pneg %p181
        $region34: #{tpu_custom_call.1} parent=11 // pred_check_branch
          %462 = sbr.rel (%p460) target = $region36
        $region35: #{tpu_custom_call.1} parent=11 // pred_region
          _
        $region36: #{tpu_custom_call.1} parent=11 // pred_fallthru
          _
        // Predicated region
        $region37: #{tpu_custom_call.1} parent=11 // pred_check
          %p463 = pneg %p202
        $region38: #{tpu_custom_call.1} parent=11 // pred_check_branch
          %465 = sbr.rel (%p463) target = $region40
        $region39: #{tpu_custom_call.1} parent=11 // pred_region
          _
        $region40: #{tpu_custom_call.1} parent=11 // pred_fallthru
          _
        // Predicated region
        $region41: #{tpu_custom_call.1} parent=11 // pred_check
          %p466 = pneg %p223
        $region42: #{tpu_custom_call.1} parent=11 // pred_check_branch
          %468 = sbr.rel (%p466) target = $region44
        $region43: #{tpu_custom_call.1} parent=11 // pred_region
          _
        $region44: #{tpu_custom_call.1} parent=11 // pred_fallthru
          _
        // Predicated region
        $region45: #{tpu_custom_call.1} parent=11 // pred_check
          %p469 = pneg %p244
        $region46: #{tpu_custom_call.1} parent=11 // pred_check_branch
          %471 = sbr.rel (%p469) target = $region48
        $region47: #{tpu_custom_call.1} parent=11 // pred_region
          %s473 = ssub.s32 16, 16
          %474 = vsyncadd [#allocation10], %s473
          %s476 = sshll.u32 %s8, 4
          %s477 = int_to_ptr.vmem [resolvable:$true] %s476
          %479 = dma.vmem_to_smem %s477, 16, [#allocation11], [#allocation10]
        $region48: #{tpu_custom_call.1} parent=11 // pred_fallthru
          _
      $region12: #{tpu_custom_call.1} parent=5 // pred_fallthru
        _
      %p480 = scmp.lt.s32.totalorder %s33, 14
      // Predicated region
      $region49: #{tpu_custom_call.1} parent=5 // pred_check
        %p481 = pneg %p480
      $region50: #{tpu_custom_call.1} parent=5 // pred_check_branch
        %483 = sbr.rel (%p481) target = $region52
      $region51: #{tpu_custom_call.1} parent=5 // pred_region
        _
      $region52: #{tpu_custom_call.1} parent=5 // pred_fallthru
        _
      %p484 = scmp.le.s32.totalorder 1, %s33
      %p485 = scmp.lt.s32.totalorder %s33, 15
      %p486 = pnand %p484, %p485
      %p487 = pneg %p486
      // Predicated region
      $region53: #{tpu_custom_call.1} parent=5 // pred_check
        _
      $region54: #{tpu_custom_call.1} parent=5 // pred_check_branch
        %489 = sbr.rel (%p486) target = $region56
      $region55: #{tpu_custom_call.1} parent=5 // pred_region
        %s490 = ssub.s32 %s33, 1
        // Predicated region
        $region57: #{tpu_custom_call.1} parent=55 // pred_check
          %p491 = pneg %p139
        $region58: #{tpu_custom_call.1} parent=55 // pred_check_branch
          %493 = sbr.rel (%p491) target = $region60
        $region59: #{tpu_custom_call.1} parent=55 // pred_region
          %494 = dma.done [#allocation8], 16
        $region60: #{tpu_custom_call.1} parent=55 // pred_fallthru
          _
        // Predicated region
        $region61: #{tpu_custom_call.1} parent=55 // pred_check
          %p495 = pneg %p244
        $region62: #{tpu_custom_call.1} parent=55 // pred_check_branch
          %497 = sbr.rel (%p495) target = $region64
        $region63: #{tpu_custom_call.1} parent=55 // pred_region
          %498 = dma.done [#allocation10], 16
        $region64: #{tpu_custom_call.1} parent=55 // pred_fallthru
          _
        %499 = sfence
        %s500 = smul.u32 2, %s42
        %p501 = scmp.lt.s32.totalorder %s500, 1
        %s502 = scalar_select %p501, %s500, 1
        %s503 = smul.addr %s502, 8
        %s504 = scalar_lea.vmem %s0, %s503
        %p505 = pneg %p71
        %p506 = pneg %p68
        %s507 = smul.u32 2, %s42
        %p508 = scmp.lt.s32.totalorder %s507, 1
        %s509 = scalar_select %p508, %s507, 1
        %s510 = smul.addr %s509, 8
        %s511 = scalar_lea.vmem %s1, %s510
        %p512 = pneg %p97
        %p513 = pneg %p94
        %p514 = pneg %p118
        %p515 = pneg %p115
        %p516 = pneg %p139
        %p517 = pneg %p136
        %p518 = pneg %p160
        %p519 = pneg %p157
        %p520 = pneg %p181
        %p521 = pneg %p178
        %p522 = pneg %p202
        %p523 = pneg %p199
        %p524 = pneg %p223
        %p525 = pneg %p220
        %p526 = pneg %p244
        %p527 = pneg %p241
        %p528 = pneg %p272
        %p529 = pneg %p269
        %s530 = sand.u32 %s259, 1
        %s531 = scalar_lea.sflag [#allocation9], %s530
        %s532 = sand.u32 %s259, 1
        %s533 = smul.addr %s532, 8
        %s534 = scalar_lea.vmem [#allocation12], %s533
        %p535 = pneg %p300
        %p536 = pneg %p297
        %s537 = sand.u32 %s38, 1
        %s538 = scalar_lea.sflag [#allocation14], %s537
        %s539 = sand.u32 %s287, 1
        %s540 = smul.addr %s539, 8
        %s541 = scalar_lea.vmem [#allocation13], %s540
        %p542 = pneg %p328
        %p543 = pneg %p325
        %s544 = sand.u32 %s38, 1
        %s545 = scalar_lea.sflag [#allocation14], %s544
        %s546 = sand.u32 %s315, 1
        %s547 = scalar_lea.vmem [#allocation15], %s546
        %p548 = pneg %p356
        %p549 = pneg %p353
        %s550 = sand.u32 %s38, 1
        %s551 = scalar_lea.sflag [#allocation17], %s550
        %s552 = sand.u32 %s343, 1
        %s553 = scalar_lea.vmem [#allocation16], %s552
        %p554 = pneg %p384
        %p555 = pneg %p381
        %s556 = sand.u32 %s38, 1
        %s557 = scalar_lea.sflag [#allocation17], %s556
        %s558 = sand.u32 %s371, 1
        %s559 = scalar_lea.vmem [#allocation18], %s558
        %p560 = pneg %p410
        %p561 = pneg %p407
        %s562 = smul.u32 2, %s42
        %p563 = scmp.lt.s32.totalorder %s562, 1
        %s564 = scalar_select %p563, %s562, 1
        %s565 = smul.addr %s564, 8
        %s566 = scalar_lea.vmem %s0, %s565
        %s567 = smul.u32 2, %s42
        %s568 = smul.u32 2, %s42
        %p569 = scmp.lt.s32.totalorder %s568, 1
        %s570 = scalar_select %p569, %s568, 1
        %s571 = smul.addr %s570, 8
        %s572 = scalar_lea.vmem %s1, %s571
        %s573 = smul.u32 2, %s42
        %s574 = smul.u32 2, %s42
        %s575 = smul.u32 2, %s42
        %p577 = scmp.eq.s32.totalorder %s43, 0
        // Predicated region
        $region65: #{tpu_custom_call.1} parent=55 // pred_check
          %p578 = pneg %p577
        $region66: #{tpu_custom_call.1} parent=55 // pred_check_branch
          %580 = sbr.rel (%p578) target = $region68
        $region67: #{tpu_custom_call.1} parent=55 // pred_region
          %v581 = vld [vmem:[%s572] sm:$0xff]
          %v582 = vld [vmem:[%s572 + $0x8] sm:$0xff]
          %vm583 = vcmask 261120
          %584 = vst.msk [vmem:[#allocation2] sm:$0xff] %vm583, %v581
          %585 = vst.msk [vmem:[#allocation2 + $0x8] sm:$0xff] %vm583, %v582
          %vm586 = vcmask 122880
          %587 = vst.msk [vmem:[#allocation3] sm:$0x1] %vm586, 0.0
          %588 = vst.msk [vmem:[#allocation4] sm:$0x1] %vm586, 0.0
          %589 = vst.msk [vmem:[#allocation5] sm:$0x1] %vm586, 0.0
          %590 = vst.msk [vmem:[#allocation6] sm:$0x1] %vm586, 0.0
        $region68: #{tpu_custom_call.1} parent=55 // pred_fallthru
          _
        %v591 = vld [vmem:[#allocation2] sm:$0xff]
        %v592 = vld [vmem:[#allocation2 + $0x8] sm:$0xff]
        %v593 = vpack.c.bf16 %v592, %v591
        %v594 = vld [vmem:[%s2] sm:$0xf]
        %v595 = vld [vmem:[%s2 + $0x4] sm:$0xf]
        %v596 = vld [vmem:[%s2 + $0x8] sm:$0xf]
        %v597 = vld [vmem:[%s2 + $0xc] sm:$0xf]
        %v598 = vld [vmem:[#allocation7] sm:$0x1]
        %v600 = vlaneseq
        %v601 = vshrl.u32 %v600, 7
        %v602 = vsub.s32 0, %v601
        %v603 = vrot.slane %v598, %v602
        %v609 = vunpack.c.l.b16 %v594
        %v610 = vunpack.c.l.b16 %v595
        %v611 = vunpack.c.l.b16 %v596
        %v612 = vunpack.c.l.b16 %v597
        %v613 = vpack.c.b16 %v610, %v609
        %v614 = vpack.c.b16 %v612, %v611
        %vm617 = vcmask 261120
        %v619 = vsel %vm617, %v593, 0
        %621 = vmatprep.subr.bf16.mxu0 0
        %622 = vmatpush1.bf16.msra.mxu0 %v613
        %623 = vmatprep.subr.bf16.mxu0 0
        %624 = vmatpush1.bf16.msra.mxu0 %v614
        %625 = vmatprep.subr.bf16.mxu0 0
        %626 = vmatpush1.bf16.msra.mxu0 0
        %627 = vmatprep.subr.bf16.mxu0 0
        %628 = vmatpush1.bf16.msra.mxu0 0
        %629 = vmatprep.subr.bf16.mxu0 0
        %630 = vmatpush1.bf16.msra.mxu0 0
        %631 = vmatprep.subr.bf16.mxu0 0
        %632 = vmatpush1.bf16.msra.mxu0 0
        %633 = vmatprep.subr.bf16.mxu0 0
        %634 = vmatpush1.bf16.msra.mxu0 0
        %635 = vmatprep.subr.bf16.mxu0 0
        %636 = vmatpush1.bf16.msra.mxu0 0
        %637 = vmatprep.subr.bf16.mxu0 0
        %638 = vmatpush1.bf16.msra.mxu0 0
        %639 = vmatprep.subr.bf16.mxu0 0
        %640 = vmatpush1.bf16.msra.mxu0 0
        %641 = vmatprep.subr.bf16.mxu0 0
        %642 = vmatpush1.bf16.msra.mxu0 0
        %643 = vmatprep.subr.bf16.mxu0 0
        %644 = vmatpush1.bf16.msra.mxu0 0
        %645 = vmatprep.subr.bf16.mxu0 0
        %646 = vmatpush1.bf16.msra.mxu0 0
        %647 = vmatprep.subr.bf16.mxu0 0
        %648 = vmatpush1.bf16.msra.mxu0 0
        %649 = vmatprep.subr.bf16.mxu0 0
        %650 = vmatpush1.bf16.msra.mxu0 0
        %651 = vmatprep.subr.bf16.mxu0 0
        %652 = vmatpush1.bf16.msra.mxu0 0
        %653 = vmatprep.mubr.bf16.mxu0 0
        %654 = vmatmul.mubr.bf16.gmra.mrb[0].mxu0 %v619
        %v655 = vpop.f32.mrb[0].mxu0
        %v656 = vadd.f32 %v603, %v655
        %v657 = vpop.f32.mrb[0].mxu0
        %v658 = vpop.f32.mrb[0].mxu0
        %v659 = vadd.f32 %v603, %v658
        %v660 = vpop.f32.mrb[0].mxu0
        %661 = vdwg.mxu0
        %v662 = vtanh.pop %v656
        %v663 = vtanh.pop %v659
        %v664 = vpack.c.bf16 %v663, %v662
        %v665 = vld [vmem:[%s4] sm:$0xf]
        %v666 = vld [vmem:[%s4 + $0x4] sm:$0xf]
        %v667 = vld [vmem:[%s4 + $0x8] sm:$0xf]
        %v668 = vld [vmem:[%s4 + $0xc] sm:$0xf]
        %v669 = vld [vmem:[%s4 + $0x10] sm:$0xf]
        %v670 = vld [vmem:[%s4 + $0x14] sm:$0xf]
        %v671 = vld [vmem:[%s4 + $0x18] sm:$0xf]
        %v672 = vld [vmem:[%s4 + $0x1c] sm:$0xf]
        %v681 = vunpack.c.l.b16 %v665
        %v682 = vunpack.c.l.b16 %v666
        %v683 = vunpack.c.l.b16 %v667
        %v684 = vunpack.c.l.b16 %v668
        %v685 = vunpack.c.l.b16 %v669
        %v686 = vunpack.c.l.b16 %v670
        %v687 = vunpack.c.l.b16 %v671
        %v688 = vunpack.c.l.b16 %v672
        %v689 = vpack.c.b16 %v682, %v681
        %v690 = vpack.c.b16 %v684, %v683
        %v691 = vpack.c.b16 %v686, %v685
        %v692 = vpack.c.b16 %v688, %v687
        %vm697 = vcmask 523264
        %v699 = vsel %vm697, %v664, 0
        %701 = vmatprep.subr.bf16.mxu0 0
        %702 = vmatpush1.bf16.msra.mxu0 %v689
        %703 = vmatprep.subr.bf16.mxu0 0
        %704 = vmatpush1.bf16.msra.mxu0 %v690
        %705 = vmatprep.subr.bf16.mxu0 0
        %706 = vmatpush1.bf16.msra.mxu0 %v691
        %707 = vmatprep.subr.bf16.mxu0 0
        %708 = vmatpush1.bf16.msra.mxu0 %v692
        %709 = vmatprep.subr.bf16.mxu0 0
        %710 = vmatpush1.bf16.msra.mxu0 0
        %711 = vmatprep.subr.bf16.mxu0 0
        %712 = vmatpush1.bf16.msra.mxu0 0
        %713 = vmatprep.subr.bf16.mxu0 0
        %714 = vmatpush1.bf16.msra.mxu0 0
        %715 = vmatprep.subr.bf16.mxu0 0
        %716 = vmatpush1.bf16.msra.mxu0 0
        %717 = vmatprep.subr.bf16.mxu0 0
        %718 = vmatpush1.bf16.msra.mxu0 0
        %719 = vmatprep.subr.bf16.mxu0 0
        %720 = vmatpush1.bf16.msra.mxu0 0
        %721 = vmatprep.subr.bf16.mxu0 0
        %722 = vmatpush1.bf16.msra.mxu0 0
        %723 = vmatprep.subr.bf16.mxu0 0
        %724 = vmatpush1.bf16.msra.mxu0 0
        %725 = vmatprep.subr.bf16.mxu0 0
        %726 = vmatpush1.bf16.msra.mxu0 0
        %727 = vmatprep.subr.bf16.mxu0 0
        %728 = vmatpush1.bf16.msra.mxu0 0
        %729 = vmatprep.subr.bf16.mxu0 0
        %730 = vmatpush1.bf16.msra.mxu0 0
        %731 = vmatprep.subr.bf16.mxu0 0
        %732 = vmatpush1.bf16.msra.mxu0 0
        %733 = vmatprep.mubr.bf16.mxu0 0
        %734 = vmatmul.mubr.bf16.gmra.mrb[0].mxu0 %v699
        %v735 = vpop.f32.mrb[0].mxu0
        %v736 = vadd.f32 0.0, %v735
        %v737 = vpop.f32.mrb[0].mxu0
        %v738 = vpop.f32.mrb[0].mxu0
        %v739 = vadd.f32 0.0, %v738
        %v740 = vpop.f32.mrb[0].mxu0
        %741 = vdwg.mxu0
        %v742 = vadd.f32 %v591, %v736
        %v743 = vadd.f32 %v592, %v739
        %v744 = vld [vmem:[%s5] sm:$0x1]
        %v746 = vlaneseq
        %v747 = vshrl.u32 %v746, 7
        %v748 = vsub.s32 0, %v747
        %v749 = vrot.slane %v744, %v748
        %v751 = vadd.f32 %v742, %v749
        %v752 = vadd.f32 %v743, %v749
        %753 = vst.msk [vmem:[#allocation2] sm:$0xff] %vm617, %v751
        %754 = vst.msk [vmem:[#allocation2 + $0x8] sm:$0xff] %vm617, %v752
        %v755 = vpack.c.bf16 %v752, %v751
        %v756 = vld [vmem:[%s6] sm:$0xff]
        %v757 = vld [vmem:[%s6 + $0x8] sm:$0xff]
        %v758 = vld [vmem:[%s6 + $0x10] sm:$0xff]
        %v759 = vld [vmem:[%s6 + $0x18] sm:$0xff]
        %v760 = vld [vmem:[%s7] sm:$0x3]
        %v762 = vlaneseq
        %v763 = vshrl.u32 %v762, 7
        %v764 = vsub.s32 0, %v763
        %v765 = vrot.slane %v760, %v764
        %v766 = vlaneseq
        %v767 = vshrl.u32 %v766, 7
        %v768 = vsub.s32 1, %v767
        %v769 = vrot.slane %v760, %v768
        %v776 = vunpack.c.l.b16 %v756
        %v777 = vunpack.c.h.b16 %v756
        %v778 = vunpack.c.l.b16 %v757
        %v779 = vunpack.c.h.b16 %v757
        %v780 = vunpack.c.l.b16 %v758
        %v781 = vunpack.c.h.b16 %v758
        %v782 = vunpack.c.l.b16 %v759
        %v783 = vunpack.c.h.b16 %v759
        %v784 = vpack.c.b16 %v778, %v776
        %v785 = vpack.c.b16 %v779, %v777
        %v786 = vpack.c.b16 %v782, %v780
        %v787 = vpack.c.b16 %v783, %v781
        %v793 = vsel %vm617, %v755, 0
        %795 = vmatprep.subr.bf16.mxu0 %v785
        %796 = vmatpush1.bf16.msra.mxu0 %v784
        %797 = vmatprep.subr.bf16.mxu0 %v787
        %798 = vmatpush1.bf16.msra.mxu0 %v786
        %799 = vmatprep.subr.bf16.mxu0 0
        %800 = vmatpush1.bf16.msra.mxu0 0
        %801 = vmatprep.subr.bf16.mxu0 0
        %802 = vmatpush1.bf16.msra.mxu0 0
        %803 = vmatprep.subr.bf16.mxu0 0
        %804 = vmatpush1.bf16.msra.mxu0 0
        %805 = vmatprep.subr.bf16.mxu0 0
        %806 = vmatpush1.bf16.msra.mxu0 0
        %807 = vmatprep.subr.bf16.mxu0 0
        %808 = vmatpush1.bf16.msra.mxu0 0
        %809 = vmatprep.subr.bf16.mxu0 0
        %810 = vmatpush1.bf16.msra.mxu0 0
        %811 = vmatprep.subr.bf16.mxu0 0
        %812 = vmatpush1.bf16.msra.mxu0 0
        %813 = vmatprep.subr.bf16.mxu0 0
        %814 = vmatpush1.bf16.msra.mxu0 0
        %815 = vmatprep.subr.bf16.mxu0 0
        %816 = vmatpush1.bf16.msra.mxu0 0
        %817 = vmatprep.subr.bf16.mxu0 0
        %818 = vmatpush1.bf16.msra.mxu0 0
        %819 = vmatprep.subr.bf16.mxu0 0
        %820 = vmatpush1.bf16.msra.mxu0 0
        %821 = vmatprep.subr.bf16.mxu0 0
        %822 = vmatpush1.bf16.msra.mxu0 0
        %823 = vmatprep.subr.bf16.mxu0 0
        %824 = vmatpush1.bf16.msra.mxu0 0
        %825 = vmatprep.subr.bf16.mxu0 0
        %826 = vmatpush1.bf16.msra.mxu0 0
        %827 = vmatprep.mubr.bf16.mxu0 0
        %828 = vmatmul.mubr.bf16.gmra.mrb[0].mxu0 %v793
        %v829 = vpop.f32.mrb[0].mxu0
        %v830 = vadd.f32 %v765, %v829
        %v831 = vpop.f32.mrb[0].mxu0
        %v832 = vadd.f32 %v769, %v831
        %v833 = vpop.f32.mrb[0].mxu0
        %v834 = vadd.f32 %v765, %v833
        %v835 = vpop.f32.mrb[0].mxu0
        %v836 = vadd.f32 %v769, %v835
        %837 = vdwg.mxu0
        %838 = vadd.xlane.f32.xlu0 %v832
        %v839 = vpop.xlane.xlu0 %838
        %840 = vadd.xlane.f32.xlu0 %v836
        %v841 = vpop.xlane.xlu0 %840
        %v842 = vxor.u32 %v839, 2147483648
        %v843 = vxor.u32 %v841, 2147483648
        %v844 = vmul.f32 %v842, 1.442695
        %v845 = vpow.pop %v844
        %v846 = vmul.f32 %v843, 1.442695
        %v847 = vpow.pop %v846
        %v848 = vadd.f32 %v845, 1.0
        %v849 = vadd.f32 %v847, 1.0
        %v850 = vrcp.pop %v848
        %v851 = vmul.f32 1.0, %v850
        %v852 = vrcp.pop %v849
        %v853 = vmul.f32 1.0, %v852
        %v854 = vlaneseq
        %v855 = vand.u32 %v854, 127
        %vm856 = vcmp.lt.s32.totalorder %v855, 16
        %v857 = vsel %vm856, %v830, -1e+30
        %v858 = vsel %vm856, %v834, -1e+30
        %859 = vmax.xlane.f32.xlu0 %v857
        %v860 = vpop.xlane.xlu0 %859
        %861 = vmax.xlane.f32.xlu0 %v858
        %v862 = vpop.xlane.xlu0 %861
        %v863 = vsub.f32 %v857, %v860
        %v864 = vsub.f32 %v858, %v862
        %v865 = vmul.f32 %v863, 1.442695
        %v866 = vpow.pop %v865
        %v867 = vmul.f32 %v864, 1.442695
        %v868 = vpow.pop %v867
        %869 = vadd.xlane.f32.xlu0 %v866
        %v870 = vpop.xlane.xlu0 %869
        %871 = vadd.xlane.f32.xlu0 %v868
        %v872 = vpop.xlane.xlu0 %871
        %v873 = vlog2.pop %v870
        %v874 = vmul.f32 %v873, 0.6931472
        %v875 = vlog2.pop %v872
        %v876 = vmul.f32 %v875, 0.6931472
        %v877 = vadd.f32 %v874, %v860
        %v878 = vadd.f32 %v876, %v862
        %v879 = vld [vmem:[%s566] sm:$0xff]
        %v880 = vld [vmem:[%s566 + $0x8] sm:$0xff]
        %881 = vset.pattern.permute.xlu0 0
        %882 = vperm.xlu0 %881, %v879
        %v883 = vpop.permute.xlu0 %882
        %884 = vset.pattern.permute.xlu0 0
        %885 = vperm.xlu0 %884, %v880
        %v886 = vpop.permute.xlu0 %885
        %vm887 = vcmp.eq.s32.totalorder %v855, %v883
        %vm888 = vcmp.eq.s32.totalorder %v855, %v886
        %v889 = vsel %vm887, %v830, 0.0
        %v890 = vsel %vm888, %v834, 0.0
        %891 = vadd.xlane.f32.xlu0 %v889
        %v892 = vpop.xlane.xlu0 %891
        %893 = vadd.xlane.f32.xlu0 %v890
        %v894 = vpop.xlane.xlu0 %893
        %v895 = vsub.f32 %v877, %v892
        %v896 = vsub.f32 %v878, %v894
        %v898 = vunpack.c.l.b16 %v755
        %v899 = vunpack.c.h.b16 %v755
        %v900 = vpack.c.b16 %v898, %v898
        %v901 = vpack.c.b16 %v899, %v899
        %vm904 = vcmask 257024
        %905 = vst.msk [vmem:[%s534] sm:$0xf] %vm904, %v900
        %906 = vst.msk [vmem:[%s534 + $0x4] sm:$0xf] %vm904, %v901
        %v907 = vpack.c.bf16 %v834, %v830
        %v909 = vunpack.c.l.b16 %v907
        %v910 = vunpack.c.h.b16 %v907
        %v911 = vpack.c.b16 %v909, %v909
        %v912 = vpack.c.b16 %v910, %v910
        %915 = vst [vmem:[%s541] sm:$0xf] %v911
        %916 = vst [vmem:[%s541 + $0x4] sm:$0xf] %v912
        %917 = vxpose.xlu0.b32.start [1/16] %v851, 128
        %918 = vxpose.xlu0.b32.cont [2/16] %v853, 128
        %919 = vxpose.xlu0.b32.cont [3/16] 0.0, 128
        %920 = vxpose.xlu0.b32.cont [4/16] 0.0, 128
        %921 = vxpose.xlu0.b32.cont [5/16] 0.0, 128
        %922 = vxpose.xlu0.b32.cont [6/16] 0.0, 128
        %923 = vxpose.xlu0.b32.cont [7/16] 0.0, 128
        %924 = vxpose.xlu0.b32.cont [8/16] 0.0, 128
        %925 = vxpose.xlu0.b32.cont [9/16] 0.0, 128
        %926 = vxpose.xlu0.b32.cont [10/16] 0.0, 128
        %927 = vxpose.xlu0.b32.cont [11/16] 0.0, 128
        %928 = vxpose.xlu0.b32.cont [12/16] 0.0, 128
        %929 = vxpose.xlu0.b32.cont [13/16] 0.0, 128
        %930 = vxpose.xlu0.b32.cont [14/16] 0.0, 128
        %931 = vxpose.xlu0.b32.cont [15/16] 0.0, 128
        %932 = vxpose.xlu0.b32.end [16/16] 0.0, 128
        %v933 = vpop.trf.xlu0
        %v934 = vpop.trf.xlu0
        %v935 = vpop.trf.xlu0
        %v936 = vpop.trf.xlu0
        %v937 = vpop.trf.xlu0
        %v938 = vpop.trf.xlu0
        %v939 = vpop.trf.xlu0
        %v940 = vpop.trf.xlu0
        %v941 = vpop.trf.xlu0
        %v942 = vpop.trf.xlu0
        %v943 = vpop.trf.xlu0
        %v944 = vpop.trf.xlu0
        %v945 = vpop.trf.xlu0
        %v946 = vpop.trf.xlu0
        %v947 = vpop.trf.xlu0
        %v948 = vpop.trf.xlu0
        %949 = vxpose.xlu0.b32.start [1/16] %v895, 128
        %950 = vxpose.xlu0.b32.cont [2/16] %v896, 128
        %951 = vxpose.xlu0.b32.cont [3/16] 0.0, 128
        %952 = vxpose.xlu0.b32.cont [4/16] 0.0, 128
        %953 = vxpose.xlu0.b32.cont [5/16] 0.0, 128
        %954 = vxpose.xlu0.b32.cont [6/16] 0.0, 128
        %955 = vxpose.xlu0.b32.cont [7/16] 0.0, 128
        %956 = vxpose.xlu0.b32.cont [8/16] 0.0, 128
        %957 = vxpose.xlu0.b32.cont [9/16] 0.0, 128
        %958 = vxpose.xlu0.b32.cont [10/16] 0.0, 128
        %959 = vxpose.xlu0.b32.cont [11/16] 0.0, 128
        %960 = vxpose.xlu0.b32.cont [12/16] 0.0, 128
        %961 = vxpose.xlu0.b32.cont [13/16] 0.0, 128
        %962 = vxpose.xlu0.b32.cont [14/16] 0.0, 128
        %963 = vxpose.xlu0.b32.cont [15/16] 0.0, 128
        %964 = vxpose.xlu0.b32.end [16/16] 0.0, 128
        %v965 = vpop.trf.xlu0
        %v966 = vpop.trf.xlu0
        %v967 = vpop.trf.xlu0
        %v968 = vpop.trf.xlu0
        %v969 = vpop.trf.xlu0
        %v970 = vpop.trf.xlu0
        %v971 = vpop.trf.xlu0
        %v972 = vpop.trf.xlu0
        %v973 = vpop.trf.xlu0
        %v974 = vpop.trf.xlu0
        %v975 = vpop.trf.xlu0
        %v976 = vpop.trf.xlu0
        %v977 = vpop.trf.xlu0
        %v978 = vpop.trf.xlu0
        %v979 = vpop.trf.xlu0
        %v980 = vpop.trf.xlu0
        %v981 = vld [vmem:[#allocation3] sm:$0x1]
        %v982 = vmul.f32 %v981, 1.442695
        %v983 = vpow.pop %v982
        %v984 = vmul.f32 %v983, %v933
        %vm985 = vcmask 122880
        %986 = vst.msk [vmem:[%s547] sm:$0x1] %vm985, %v933
        %987 = vst.msk [vmem:[%s553] sm:$0x1] %vm985, %v965
        %988 = vst.msk [vmem:[%s559] sm:$0x1] %vm985, %v984
        %s989 = sld [smem:[#allocation11 + %s43]]
        %v990 = vld [vmem:[#allocation4] sm:$0x1]
        %v991 = vadd.f32 %v990, %v984
        %992 = vst.msk [vmem:[#allocation4] sm:$0x1] %vm985, %v991
        %v993 = vld [vmem:[#allocation5] sm:$0x1]
        %v994 = vmul.f32 %v965, %v984
        %v995 = vadd.f32 %v993, %v994
        %996 = vst.msk [vmem:[#allocation5] sm:$0x1] %vm985, %v995
        %v997 = vld [vmem:[#allocation6] sm:$0x1]
        %v998 = vmax.f32 %v984, 1e-30
        %v999 = vlog2.pop %v998
        %v1000 = vmul.f32 %v999, 0.6931472
        %v1001 = vstv %s989
        %v1002 = vsub.f32 %v1000, %v1001
        %v1003 = vmul.f32 %v984, %v1002
        %v1004 = vadd.f32 %v997, %v1003
        %1005 = vst.msk [vmem:[#allocation6] sm:$0x1] %vm985, %v1004
        %v1006 = vld [vmem:[#allocation3] sm:$0x1]
        %v1007 = vsub.f32 1.0, %v933
        %v1008 = vmax.f32 %v1007, 1e-10
        %v1009 = vmin.f32 %v1008, 1.0
        %v1010 = vlog2.pop %v1009
        %v1011 = vmul.f32 %v1010, 0.6931472
        %v1012 = vadd.f32 %v1006, %v1011
        %1013 = vst.msk [vmem:[#allocation3] sm:$0x1] %vm985, %v1012
        %p1014 = scmp.eq.s32.totalorder %s43, 13
        // Predicated region
        $region69: #{tpu_custom_call.1} parent=55 // pred_check
          %p1015 = pneg %p1014
        $region70: #{tpu_custom_call.1} parent=55 // pred_check_branch
          %1017 = sbr.rel (%p1015) target = $region72
        $region71: #{tpu_custom_call.1} parent=55 // pred_region
          %v1018 = vld [vmem:[#allocation4] sm:$0x1]
          %v1019 = vmax.f32 %v1018, 1e-30
          %v1020 = vld [vmem:[#allocation5] sm:$0x1]
          %v1021 = vrcp.pop %v1019
          %v1022 = vmul.f32 %v1020, %v1021
          %v1023 = vld [vmem:[#allocation6] sm:$0x1]
          %v1024 = vmul.f32 %v1023, %v1021
          %v1025 = vlog2.pop %v1019
          %v1026 = vmul.f32 %v1025, 0.6931472
          %v1027 = vsub.f32 %v1024, %v1026
          %v1028 = vsel %vm985, %v1022, 0.0
          %1029 = vadd.xlane.f32.xlu0 %v1028
          %v1030 = vpop.xlane.xlu0 %1029
          %v1031 = vrot.slane %v1030, 4
          %v1032 = vadd.f32 %v1030, %v1031
          %v1033 = vrot.slane %v1032, 2
          %v1034 = vadd.f32 %v1032, %v1033
          %v1035 = vrot.slane %v1034, 1
          %v1036 = vadd.f32 %v1034, %v1035
          %s1037 = vtos %v1036
          %v1038 = vsel %vm985, %v1027, 0.0
          %1039 = vadd.xlane.f32.xlu0 %v1038
          %v1040 = vpop.xlane.xlu0 %1039
          %v1041 = vrot.slane %v1040, 4
          %v1042 = vadd.f32 %v1040, %v1041
          %v1043 = vrot.slane %v1042, 2
          %v1044 = vadd.f32 %v1042, %v1043
          %v1045 = vrot.slane %v1044, 1
          %v1046 = vadd.f32 %v1044, %v1045
          %s1047 = vtos %v1046
          %v1048 = vlaneseq
          %v1049 = vshrl.u32 %v1048, 7
          %vm1050 = vcmp.eq.s32.totalorder %v1049, 0
          %vm1051 = vcmp.eq.s32.totalorder %v855, 0
          %vm1052 = vmand %vm1050, %vm1051
          %v1053 = vstv %s1037
          %v1054 = vsel %vm1052, %v1053, 0.0
          %vm1055 = vcmp.eq.s32.totalorder %v855, 1
          %vm1056 = vmand %vm1050, %vm1055
          %v1057 = vstv %s1047
          %v1058 = vsel %vm1056, %v1057, 0.0
          %v1059 = vadd.f32 %v1054, %v1058
          %1060 = vst [vmem:[#allocation19] sm:$0xff] %v1059
        $region72: #{tpu_custom_call.1} parent=55 // pred_fallthru
          _
        %s1061 = sand.u32 %s259, 1
        %s1062 = scalar_lea.sflag [#allocation9], %s1061
        %s1063 = sand.u32 %s259, 1
        %s1064 = smul.addr %s1063, 8
        %s1065 = scalar_lea.vmem [#allocation12], %s1064
        %s1066 = sand.u32 %s38, 1
        %s1067 = scalar_lea.sflag [#allocation14], %s1066
        %s1068 = sand.u32 %s287, 1
        %s1069 = smul.addr %s1068, 8
        %s1070 = scalar_lea.vmem [#allocation13], %s1069
        %s1071 = sand.u32 %s38, 1
        %s1072 = scalar_lea.sflag [#allocation14], %s1071
        %s1073 = sand.u32 %s315, 1
        %s1074 = scalar_lea.vmem [#allocation15], %s1073
        %s1075 = sand.u32 %s38, 1
        %s1076 = scalar_lea.sflag [#allocation17], %s1075
        %s1077 = sand.u32 %s343, 1
        %s1078 = scalar_lea.vmem [#allocation16], %s1077
        %s1079 = sand.u32 %s38, 1
        %s1080 = scalar_lea.sflag [#allocation17], %s1079
        %s1081 = sand.u32 %s371, 1
        %s1082 = scalar_lea.vmem [#allocation18], %s1081
        // Predicated region
        $region73: #{tpu_custom_call.1} parent=55 // pred_check
          %p1083 = pneg %p269
        $region74: #{tpu_custom_call.1} parent=55 // pred_check_branch
          %1085 = sbr.rel (%p1083) target = $region76
        $region75: #{tpu_custom_call.1} parent=55 // pred_region
          %s1086 = smul.u32 2, %s42
          %s1088 = ssub.s32 128, 128
          %1089 = vsyncadd %s1062, %s1088
          %s1090 = smul.addr %s43, 2
          %s1091 = sadd.s32 %s1086, %s1090
          %s1092 = smul.addr %s1091, 64
          %s1093 = scalar_lea.hbm %s9, %s1092
          %s1094 = sshll.u32 %s1065, 4
          %s1095 = int_to_ptr.vmem [resolvable:$true] %s1094
          %1100 = dma.vmem_to_hbm [thread:$0]  %s1095, 128, %s1093, %s1062, 64, 64, 4
        $region76: #{tpu_custom_call.1} parent=55 // pred_fallthru
          _
        // Predicated region
        $region77: #{tpu_custom_call.1} parent=55 // pred_check
          %p1101 = pneg %p297
        $region78: #{tpu_custom_call.1} parent=55 // pred_check_branch
          %1103 = sbr.rel (%p1101) target = $region80
        $region79: #{tpu_custom_call.1} parent=55 // pred_region
          %s1104 = smul.u32 2, %s42
          %s1106 = ssub.s32 128, 128
          %1107 = vsyncadd %s1067, %s1106
          %s1108 = smul.addr %s43, 2
          %s1109 = sadd.s32 %s1104, %s1108
          %s1110 = smul.addr %s1109, 64
          %s1111 = scalar_lea.hbm %s10, %s1110
          %s1112 = sshll.u32 %s1070, 4
          %s1113 = int_to_ptr.vmem [resolvable:$true] %s1112
          %1118 = dma.vmem_to_hbm [thread:$0]  %s1113, 128, %s1111, %s1067, 64, 64, 4
        $region80: #{tpu_custom_call.1} parent=55 // pred_fallthru
          _
        // Predicated region
        $region81: #{tpu_custom_call.1} parent=55 // pred_check
          %p1119 = pneg %p325
        $region82: #{tpu_custom_call.1} parent=55 // pred_check_branch
          %1121 = sbr.rel (%p1119) target = $region84
        $region83: #{tpu_custom_call.1} parent=55 // pred_region
          %s1123 = ssub.s32 16, 16
          %1124 = vsyncadd %s1072, %s1123
          %s1125 = sadd.s32 %s42, %s43
          %s1126 = smul.addr %s1125, 16
          %s1127 = scalar_lea.hbm %s11, %s1126
          %s1129 = sshll.u32 %s1074, 4
          %s1130 = int_to_ptr.vmem [resolvable:$true] %s1129
          %1132 = dma.vmem_to_hbm [thread:$0]  %s1130, 16, %s1127, %s1072
        $region84: #{tpu_custom_call.1} parent=55 // pred_fallthru
          _
        // Predicated region
        $region85: #{tpu_custom_call.1} parent=55 // pred_check
          %p1133 = pneg %p353
        $region86: #{tpu_custom_call.1} parent=55 // pred_check_branch
          %1135 = sbr.rel (%p1133) target = $region88
        $region87: #{tpu_custom_call.1} parent=55 // pred_region
          %s1137 = ssub.s32 16, 16
          %1138 = vsyncadd %s1076, %s1137
          %s1139 = sadd.s32 %s42, %s43
          %s1140 = smul.addr %s1139, 16
          %s1141 = scalar_lea.hbm %s12, %s1140
          %s1143 = sshll.u32 %s1078, 4
          %s1144 = int_to_ptr.vmem [resolvable:$true] %s1143
          %1146 = dma.vmem_to_hbm [thread:$0]  %s1144, 16, %s1141, %s1076
        $region88: #{tpu_custom_call.1} parent=55 // pred_fallthru
          _
        // Predicated region
        $region89: #{tpu_custom_call.1} parent=55 // pred_check
          %p1147 = pneg %p381
        $region90: #{tpu_custom_call.1} parent=55 // pred_check_branch
          %1149 = sbr.rel (%p1147) target = $region92
        $region91: #{tpu_custom_call.1} parent=55 // pred_region
          %s1151 = ssub.s32 16, 16
          %1152 = vsyncadd %s1080, %s1151
          %s1153 = sadd.s32 %s42, %s43
          %s1154 = smul.addr %s1153, 16
          %s1155 = scalar_lea.hbm %s13, %s1154
          %s1157 = sshll.u32 %s1082, 4
          %s1158 = int_to_ptr.vmem [resolvable:$true] %s1157
          %1160 = dma.vmem_to_hbm [thread:$0]  %s1158, 16, %s1155, %s1080
        $region92: #{tpu_custom_call.1} parent=55 // pred_fallthru
          _
        // Predicated region
        $region93: #{tpu_custom_call.1} parent=55 // pred_check
          %p1161 = pneg %p407
        $region94: #{tpu_custom_call.1} parent=55 // pred_check_branch
          %1163 = sbr.rel (%p1161) target = $region96
        $region95: #{tpu_custom_call.1} parent=55 // pred_region
          %s1165 = ssub.s32 128, 128
          %1166 = vsyncadd [#allocation20], %s1165
          %s1167 = smul.addr %s42, 128
          %s1168 = scalar_lea.hbm %s14, %s1167
          %s1170 = sshll.u32 [#allocation19], 4
          %s1171 = int_to_ptr.vmem [resolvable:$true] %s1170
          %1173 = dma.vmem_to_hbm [thread:$0]  %s1171, 128, %s1168, [#allocation20]
        $region96: #{tpu_custom_call.1} parent=55 // pred_fallthru
          _
        // Predicated region
        $region97: #{tpu_custom_call.1} parent=55 // pred_check
          %p1174 = pneg %p407
        $region98: #{tpu_custom_call.1} parent=55 // pred_check_branch
          %1176 = sbr.rel (%p1174) target = $region100
        $region99: #{tpu_custom_call.1} parent=55 // pred_region
          %1177 = dma.done [#allocation20], 128
        $region100: #{tpu_custom_call.1} parent=55 // pred_fallthru
          _
      $region56: #{tpu_custom_call.1} parent=5 // pred_fallthru
        _
      %p1178 = scmp.le.s32.totalorder 2, %s33
      // Predicated region
      $region101: #{tpu_custom_call.1} parent=5 // pred_check
        %p1179 = pneg %p1178
      $region102: #{tpu_custom_call.1} parent=5 // pred_check_branch
        %1181 = sbr.rel (%p1179) target = $region104
      $region103: #{tpu_custom_call.1} parent=5 // pred_region
        %s1182 = ssub.s32 %s33, 2
        // Predicated region
        $region105: #{tpu_custom_call.1} parent=103 // pred_check
          %p1183 = pneg %p275
        $region106: #{tpu_custom_call.1} parent=103 // pred_check_branch
          %1185 = sbr.rel (%p1183) target = $region108
        $region107: #{tpu_custom_call.1} parent=103 // pred_region
          %s1186 = sand.u32 %s260, 1
          %s1187 = scalar_lea.sflag [#allocation9], %s1186
          %s1188 = sand.u32 %s260, 1
          %s1189 = smul.addr %s1188, 8
          %s1190 = scalar_lea.vmem [#allocation12], %s1189
          %1191 = dma.done %s1187, 128
        $region108: #{tpu_custom_call.1} parent=103 // pred_fallthru
          _
        // Predicated region
        $region109: #{tpu_custom_call.1} parent=103 // pred_check
          %p1192 = pneg %p303
        $region110: #{tpu_custom_call.1} parent=103 // pred_check_branch
          %1194 = sbr.rel (%p1192) target = $region112
        $region111: #{tpu_custom_call.1} parent=103 // pred_region
          %s1195 = sand.u32 %s39, 1
          %s1196 = scalar_lea.sflag [#allocation14], %s1195
          %s1197 = sand.u32 %s288, 1
          %s1198 = smul.addr %s1197, 8
          %s1199 = scalar_lea.vmem [#allocation13], %s1198
          %1200 = dma.done %s1196, 128
        $region112: #{tpu_custom_call.1} parent=103 // pred_fallthru
          _
        // Predicated region
        $region113: #{tpu_custom_call.1} parent=103 // pred_check
          %p1201 = pneg %p331
        $region114: #{tpu_custom_call.1} parent=103 // pred_check_branch
          %1203 = sbr.rel (%p1201) target = $region116
        $region115: #{tpu_custom_call.1} parent=103 // pred_region
          %s1204 = sand.u32 %s39, 1
          %s1205 = scalar_lea.sflag [#allocation14], %s1204
          %s1206 = sand.u32 %s316, 1
          %s1207 = scalar_lea.vmem [#allocation15], %s1206
          %1208 = dma.done %s1205, 16
        $region116: #{tpu_custom_call.1} parent=103 // pred_fallthru
          _
        // Predicated region
        $region117: #{tpu_custom_call.1} parent=103 // pred_check
          %p1209 = pneg %p359
        $region118: #{tpu_custom_call.1} parent=103 // pred_check_branch
          %1211 = sbr.rel (%p1209) target = $region120
        $region119: #{tpu_custom_call.1} parent=103 // pred_region
          %s1212 = sand.u32 %s39, 1
          %s1213 = scalar_lea.sflag [#allocation17], %s1212
          %s1214 = sand.u32 %s344, 1
          %s1215 = scalar_lea.vmem [#allocation16], %s1214
          %1216 = dma.done %s1213, 16
        $region120: #{tpu_custom_call.1} parent=103 // pred_fallthru
          _
        // Predicated region
        $region121: #{tpu_custom_call.1} parent=103 // pred_check
          %p1217 = pneg %p387
        $region122: #{tpu_custom_call.1} parent=103 // pred_check_branch
          %1219 = sbr.rel (%p1217) target = $region124
        $region123: #{tpu_custom_call.1} parent=103 // pred_region
          %s1220 = sand.u32 %s39, 1
          %s1221 = scalar_lea.sflag [#allocation17], %s1220
          %s1222 = sand.u32 %s372, 1
          %s1223 = scalar_lea.vmem [#allocation18], %s1222
          %1224 = dma.done %s1221, 16
        $region124: #{tpu_custom_call.1} parent=103 // pred_fallthru
          _
      $region104: #{tpu_custom_call.1} parent=5 // pred_fallthru
        _
    $region6: #{tpu_custom_call.1} parent=1 // loop_footer
      %s37 = sadd.s32 1, %s33
    $region7: #{tpu_custom_call.1} parent=1 // loop_footer_branch
      %32 = sbr.rel target = $region3
    $region8: #{tpu_custom_call.1} parent=1 // loop_exit
      _
    %1225 = vsyncpa [#allocation8], 1
    %s1226 = scalar_lea.sflag [#allocation8], 1
    %1227 = vsyncpa %s1226, 1
    %1228 = vsyncpa [#allocation9], 1
    %s1229 = scalar_lea.sflag [#allocation9], 1
    %1230 = vsyncpa %s1229, 1
    %1231 = vsyncpa [#allocation14], 1
    %s1232 = scalar_lea.sflag [#allocation14], 1
    %1233 = vsyncpa %s1232, 1
    %1234 = vsyncpa [#allocation17], 1
    %s1235 = scalar_lea.sflag [#allocation17], 1
    %1236 = vsyncpa %s1235, 1
    %1237 = vsyncpa [#allocation20], 1
    %1238 = vsyncpa [#allocation10], 1
    %s1239 = scalar_lea.sflag [#allocation10], 1
    %1240 = vsyncpa %s1239, 1

</llo_original>
